<compile_context>
chip_gen: v6e
topology: v6e:2x2x1
jax: 0.10.0
libtpu: 0.0.40
codegen_flags: <defaults>
</compile_context>

<pallas_src>
import functools
import math

import jax
import jax.numpy as jnp
from jax.experimental import pallas as pl
from jax.experimental.pallas import tpu as pltpu


def _round_up(a, b):
    return (a + b - 1) // b * b


def _atd_ca_kernel(x_ref, td_ref, wq_ref, bq_ref, wk_ref, bk_ref,
                   wv_ref, bv_ref, mult_ref, packed_ref, *, eps):
    # x_ref:   (1, tn, C)        td_ref: (1, M, C)
    # wq/wk:   (C, RC)           wv:     (C, Cp)   (zero-padded cols C..Cp-1)
    # bq/bk:   (1, RC)           bv:     (1, Cp)   mult: (M, 1) f32
    # packed_ref: (1, tn, Cp+M)  out -> lanes [0, Cp), attn -> lanes [Cp, Cp+M)
    x = x_ref[0]                       # native dtype (f32 or bf16)
    td = td_ref[0]
    mm_dtype = x.dtype

    # Projections (k/v recomputed per tile; negligible vs. the x-tile DMA).
    q = jnp.dot(x, wq_ref[...], preferred_element_type=jnp.float32) + bq_ref[...]
    k = jnp.dot(td, wk_ref[...], preferred_element_type=jnp.float32) + bk_ref[...]
    v = jnp.dot(td, wv_ref[...], preferred_element_type=jnp.float32) + bv_ref[...]

    # F.normalize(p=2, dim=-1): x / max(||x||, eps) as reciprocal-multiply.
    inv_q = pl.reciprocal(
        jnp.maximum(jnp.sqrt(jnp.sum(q * q, axis=-1, keepdims=True)), eps),
        approx=False)
    inv_k = pl.reciprocal(
        jnp.maximum(jnp.sqrt(jnp.sum(k * k, axis=-1, keepdims=True)), eps),
        approx=False)
    qn = q * inv_q                                            # (tn, RC) f32
    # Fold (1 + clamp(scale,0,1)*log M) into kn's rows; the qn @ kn^T matmul
    # applies the per-dictionary-token scale for free.
    kn = (k * inv_k) * mult_ref[...]                          # (M, RC) f32

    logits = jax.lax.dot_general(
        qn.astype(mm_dtype), kn.astype(mm_dtype),
        (((1,), (1,)), ((), ())),
        preferred_element_type=jnp.float32)                   # (tn, M)

    # Softmax over the dictionary axis (f32 math, reciprocal-multiply).
    logits = logits - jnp.max(logits, axis=-1, keepdims=True)
    p = jnp.exp(logits)
    p = p * pl.reciprocal(jnp.sum(p, axis=-1, keepdims=True), approx=False)

    out = jnp.dot(p.astype(mm_dtype), v.astype(mm_dtype),
                  preferred_element_type=jnp.float32)         # (tn, Cp), pad cols = 0

    packed = jnp.concatenate([out, p], axis=-1)               # (tn, Cp + M)
    packed_ref[0] = packed.astype(packed_ref.dtype)


def atd_ca_forward(x, td, wq, bq, wk, bk, wv, bv, scale, *,
                   eps=1e-12, tile=2048, out_dtype=None, split_outputs=True):
    """ATD_CA forward.

    x:     (B, N, C)   input tokens
    td:    (B, M, C)   token dictionary
    wq,bq: (C, RC), (RC,)    wk,bk: (C, RC), (RC,)    wv,bv: (C, C), (C,)
    scale: (M,)
    Returns (out (B, N, C), attn (B, N, M)); or the packed (B, N, W) slab when
    split_outputs=False (out in lanes [0,C), attn in lanes [W-M, W)).
    NOTE: the PyTorch forward's `x_size` argument is unused there; omitted here.
    """
    B, N, C = x.shape
    Bt, M, Ct = td.shape
    assert Bt == B and Ct == C
    RC = wq.shape[1]
    io_dtype = x.dtype
    out_dtype = io_dtype if out_dtype is None else out_dtype

    if bq is None:
        bq = jnp.zeros((RC,), jnp.float32)
    if bk is None:
        bk = jnp.zeros((RC,), jnp.float32)
    if bv is None:
        bv = jnp.zeros((C,), jnp.float32)

    # --- lane-dense packed output geometry ----------------------------------
    W = _round_up(C + M, 128)      # packed last dim: multiple of 128 lanes
    Cp = W - M                     # width of the `out` half (>= C, zero-padded)

    # --- tile selection + ragged-tail padding (no divisibility assert) ------
    tn = min(int(tile), _round_up(N, 8))
    tn = max(8, _round_up(tn, 8))
    if B < 2:
        # v7x has 2 TensorCores: give the N axis at least 2 grid steps.
        tn = min(tn, max(8, _round_up(-(-N // 2), 8)))
    n_pad = _round_up(N, tn)
    if n_pad != N:
        x = jnp.pad(x, ((0, 0), (0, n_pad - N), (0, 0)))
    grid = (B, n_pad // tn)

    # --- parameter presentation ----------------------------------------------
    # Matmul operands in the I/O dtype (bf16 inputs -> native MXU); biases and
    # the folded softmax scale stay f32.
    td = td.astype(io_dtype)
    wq_c = wq.astype(io_dtype)
    wk_c = wk.astype(io_dtype)
    wv_c = jnp.pad(wv.astype(io_dtype), ((0, 0), (0, Cp - C)))
    bq2 = bq.reshape(1, RC).astype(jnp.float32)
    bk2 = bk.reshape(1, RC).astype(jnp.float32)
    bv2 = jnp.pad(bv.astype(jnp.float32), (0, Cp - C)).reshape(1, Cp)
    mult = (1.0 + jnp.clip(scale.astype(jnp.float32), 0.0, 1.0)
            * math.log(M)).reshape(M, 1)

    x_spec = pl.BlockSpec((1, tn, C), lambda b, t: (b, t, 0))
    td_spec = pl.BlockSpec((1, M, C), lambda b, t: (b, 0, 0))
    wq_spec = pl.BlockSpec((C, RC), lambda b, t: (0, 0))
    bq_spec = pl.BlockSpec((1, RC), lambda b, t: (0, 0))
    wk_spec = pl.BlockSpec((C, RC), lambda b, t: (0, 0))
    bk_spec = pl.BlockSpec((1, RC), lambda b, t: (0, 0))
    wv_spec = pl.BlockSpec((C, Cp), lambda b, t: (0, 0))
    bv_spec = pl.BlockSpec((1, Cp), lambda b, t: (0, 0))
    mult_spec = pl.BlockSpec((M, 1), lambda b, t: (0, 0))
    packed_spec = pl.BlockSpec((1, tn, W), lambda b, t: (b, t, 0))

    # --- VMEM budget: double-buffered blocks + params + f32 temps, headroom;
    # cap derived from the hardware (v7x only has 64 MiB physical VMEM).
    elem = jnp.dtype(io_dtype).itemsize
    oelem = jnp.dtype(out_dtype).itemsize
    blk_in = tn * C * elem
    blk_out = tn * W * oelem
    fixed = (M * C * elem + (2 * C * RC + C * Cp) * elem
             + (2 * RC + Cp + M + M) * 4)
    tmp = tn * (2 * RC + 2 * M + Cp + W) * 4
    est = 2 * (blk_in + blk_out) + fixed + tmp
    try:
        vmem_cap = int(pltpu.get_tpu_info().vmem_capacity_bytes)
    except Exception:
        vmem_cap = 128 * 1024 * 1024
    vmem_limit = int(min(0.6 * vmem_cap, max(16 * 1024 * 1024, 4 * est)))

    cparams = pltpu.CompilerParams(
        dimension_semantics=("parallel", "parallel"),
        vmem_limit_bytes=vmem_limit,
    )

    packed = pl.pallas_call(
        functools.partial(_atd_ca_kernel, eps=float(eps)),
        out_shape=jax.ShapeDtypeStruct((B, n_pad, W), out_dtype),
        grid_spec=pltpu.PrefetchScalarGridSpec(
            num_scalar_prefetch=0,
            grid=grid,
            in_specs=[x_spec, td_spec, wq_spec, bq_spec, wk_spec, bk_spec,
                      wv_spec, bv_spec, mult_spec],
            out_specs=packed_spec,
        ),
        compiler_params=cparams,
    )(x, td, wq_c, bq2, wk_c, bk2, wv_c, bv2, mult)

    if not split_outputs:
        return packed[:, :N]
    out = packed[:, :N, :C]
    attn = packed[:, :N, Cp:Cp + M]
    return out, attn


def _reference(x, td, wq, bq, wk, bk, wv, bv, scale, eps=1e-12):
    M = td.shape[1]
    q = jnp.einsum("bnc,cr->bnr", x, wq) + bq
    k = jnp.einsum("bmc,cr->bmr", td, wk) + bk
    v = jnp.einsum("bmc,cd->bmd", td, wv) + bv
    qn = q / jnp.maximum(jnp.linalg.norm(q, axis=-1, keepdims=True), eps)
    kn = k / jnp.maximum(jnp.linalg.norm(k, axis=-1, keepdims=True), eps)
    attn = jnp.einsum("bnr,bmr->bnm", qn, kn)
    sc = jnp.clip(scale, 0.0, 1.0)
    attn = attn * (1.0 + sc * math.log(M))
    attn = jax.nn.softmax(attn, axis=-1)
    out = jnp.einsum("bnm,bmc->bnc", attn, v)
    return out, attn


if __name__ == "__main__":
    # ATD_CA(dim=48, input_resolution=(16,16), num_tokens=64, reducted_dim=10)
    B, C, H, W_img = 2, 48, 16, 16
    M, RC = 64, 10
    N = H * W_img

    key = jax.random.PRNGKey(0)
    ks = jax.random.split(key, 9)
    x = jax.random.normal(ks[0], (B, N, C), jnp.float32)
    td = jax.random.normal(ks[1], (B, M, C), jnp.float32)
    wq = jax.random.normal(ks[2], (C, RC), jnp.float32) * 0.1
    bq = jax.random.normal(ks[3], (RC,), jnp.float32) * 0.1
    wk = jax.random.normal(ks[4], (C, RC), jnp.float32) * 0.1
    bk = jax.random.normal(ks[5], (RC,), jnp.float32) * 0.1
    wv = jax.random.normal(ks[6], (C, C), jnp.float32) * 0.1
    bv = jax.random.normal(ks[7], (C,), jnp.float32) * 0.1
    # Random scale (deterministic) so clamp(0,1) is actually exercised.
    scale = jax.random.uniform(ks[8], (M,), jnp.float32, minval=-0.25, maxval=1.25)

    # f32 path vs. reference.
    out, attn = atd_ca_forward(x, td, wq, bq, wk, bk, wv, bv, scale)
    out, attn = jax.block_until_ready((out, attn))
    ref_out, ref_attn = _reference(x, td, wq, bq, wk, bk, wv, bv, scale)
    assert out.shape == (B, N, C) and attn.shape == (B, N, M)
    assert jnp.allclose(out, ref_out, atol=1e-4, rtol=1e-4)
    assert jnp.allclose(attn, ref_attn, atol=1e-4, rtol=1e-4)

    # Ragged-tail path: N not a multiple of the tile (exercises pad + slice).
    N2 = 250
    x2 = jax.random.normal(jax.random.PRNGKey(1), (B, N2, C), jnp.float32)
    out2, attn2 = atd_ca_forward(x2, td, wq, bq, wk, bk, wv, bv, scale)
    out2, attn2 = jax.block_until_ready((out2, attn2))
    ref_out2, ref_attn2 = _reference(x2, td, wq, bq, wk, bk, wv, bv, scale)
    assert out2.shape == (B, N2, C) and attn2.shape == (B, N2, M)
    assert jnp.allclose(out2, ref_out2, atol=1e-4, rtol=1e-4)
    assert jnp.allclose(attn2, ref_attn2, atol=1e-4, rtol=1e-4)

    # B == 1 path: tile is halved so both v7x TensorCores get work.
    out3, attn3 = atd_ca_forward(x[:1], td[:1], wq, bq, wk, bk, wv, bv, scale)
    out3, attn3 = jax.block_until_ready((out3, attn3))
    ref_out3, ref_attn3 = _reference(x[:1], td[:1], wq, bq, wk, bk, wv, bv, scale)
    assert jnp.allclose(out3, ref_out3, atol=1e-4, rtol=1e-4)
    assert jnp.allclose(attn3, ref_attn3, atol=1e-4, rtol=1e-4)

    # bf16 I/O smoke test (native-MXU matmul path; loose tolerance for bf16
    # input/weight rounding — softmax math itself stays f32 in the kernel).
    xb = x.astype(jnp.bfloat16)
    tdb = td.astype(jnp.bfloat16)
    outb, attnb = atd_ca_forward(xb, tdb, wq, bq, wk, bk, wv, bv, scale)
    outb, attnb = jax.block_until_ready((outb, attnb))
    assert outb.dtype == jnp.bfloat16 and attnb.dtype == jnp.bfloat16
    assert jnp.allclose(outb.astype(jnp.float32), ref_out, atol=1e-1, rtol=1e-1)
    assert jnp.allclose(attnb.astype(jnp.float32), ref_attn, atol=1e-1, rtol=1e-1)

    print("KERNEL_OK")
</pallas_src>

<mosaic_0001>
module attributes {stable_mosaic.version = 11 : i64} {
  func.func @_atd_ca_kernel(%arg0: i32, %arg1: i32, %arg2: memref<1x256x48xf32, #tpu.memory_space<vmem>>, %arg3: memref<1x64x48xf32, #tpu.memory_space<vmem>>, %arg4: memref<48x10xf32, #tpu.memory_space<vmem>>, %arg5: memref<1x10xf32, #tpu.memory_space<vmem>>, %arg6: memref<48x10xf32, #tpu.memory_space<vmem>>, %arg7: memref<1x10xf32, #tpu.memory_space<vmem>>, %arg8: memref<48x64xf32, #tpu.memory_space<vmem>>, %arg9: memref<1x64xf32, #tpu.memory_space<vmem>>, %arg10: memref<64x1xf32, #tpu.memory_space<vmem>>, %arg11: memref<1x256x128xf32, #tpu.memory_space<vmem>>) attributes {dimension_semantics = [#tpu.dimension_semantics<parallel>, #tpu.dimension_semantics<parallel>], iteration_bounds = array<i64: 2, 1>, scalar_prefetch = 0 : i64, scratch_operands = 0 : i64, tpu.core_type = #tpu.core_type<tc>, window_params = [{transform_indices = @transform_0, window_bounds = array<i64: 1, 256, 48>}, {transform_indices = @transform_1, window_bounds = array<i64: 1, 64, 48>}, {pipeline_mode = #tpu.pipeline_mode<synchronous>, transform_indices = @transform_2, window_bounds = array<i64: 48, 10>}, {pipeline_mode = #tpu.pipeline_mode<synchronous>, transform_indices = @transform_3, window_bounds = array<i64: 1, 10>}, {pipeline_mode = #tpu.pipeline_mode<synchronous>, transform_indices = @transform_4, window_bounds = array<i64: 48, 10>}, {pipeline_mode = #tpu.pipeline_mode<synchronous>, transform_indices = @transform_5, window_bounds = array<i64: 1, 10>}, {pipeline_mode = #tpu.pipeline_mode<synchronous>, transform_indices = @transform_6, window_bounds = array<i64: 48, 64>}, {pipeline_mode = #tpu.pipeline_mode<synchronous>, transform_indices = @transform_7, window_bounds = array<i64: 1, 64>}, {pipeline_mode = #tpu.pipeline_mode<synchronous>, transform_indices = @transform_8, window_bounds = array<i64: 64, 1>}, {transform_indices = @transform_9, window_bounds = array<i64: 1, 256, 128>}]} {
    %c0 = arith.constant 0 : index
    %c0_0 = arith.constant 0 : index
    %c0_1 = arith.constant 0 : index
    %0 = vector.load %arg2[%c0, %c0_0, %c0_1] : memref<1x256x48xf32, #tpu.memory_space<vmem>>, vector<1x256x48xf32>
    %1 = vector.shape_cast %0 : vector<1x256x48xf32> to vector<256x48xf32>
    %c0_2 = arith.constant 0 : index
    %c0_3 = arith.constant 0 : index
    %c0_4 = arith.constant 0 : index
    %2 = vector.load %arg3[%c0_2, %c0_3, %c0_4] : memref<1x64x48xf32, #tpu.memory_space<vmem>>, vector<1x64x48xf32>
    %3 = vector.shape_cast %2 : vector<1x64x48xf32> to vector<64x48xf32>
    %c0_5 = arith.constant 0 : index
    %c0_6 = arith.constant 0 : index
    %4 = vector.load %arg4[%c0_5, %c0_6] : memref<48x10xf32, #tpu.memory_space<vmem>>, vector<48x10xf32>
    %cst = arith.constant dense<0.000000e+00> : vector<256x10xf32>
    %5 = tpu.matmul %1, %4, %cst {dimension_numbers = #tpu.dot_dimension_numbers<[1], [0], [0], [1], [0, 0, 1, 1], [], []>} : vector<256x48xf32>, vector<48x10xf32>, vector<256x10xf32> -> vector<256x10xf32>
    %c0_7 = arith.constant 0 : index
    %c0_8 = arith.constant 0 : index
    %6 = vector.load %arg5[%c0_7, %c0_8] : memref<1x10xf32, #tpu.memory_space<vmem>>, vector<1x10xf32>
    %7 = vector.broadcast %6 : vector<1x10xf32> to vector<256x10xf32>
    %8 = arith.addf %5, %7 : vector<256x10xf32>
    %c0_9 = arith.constant 0 : index
    %c0_10 = arith.constant 0 : index
    %9 = vector.load %arg6[%c0_9, %c0_10] : memref<48x10xf32, #tpu.memory_space<vmem>>, vector<48x10xf32>
    %cst_11 = arith.constant dense<0.000000e+00> : vector<64x10xf32>
    %10 = tpu.matmul %3, %9, %cst_11 {dimension_numbers = #tpu.dot_dimension_numbers<[1], [0], [0], [1], [0, 0, 1, 1], [], []>} : vector<64x48xf32>, vector<48x10xf32>, vector<64x10xf32> -> vector<64x10xf32>
    %c0_12 = arith.constant 0 : index
    %c0_13 = arith.constant 0 : index
    %11 = vector.load %arg7[%c0_12, %c0_13] : memref<1x10xf32, #tpu.memory_space<vmem>>, vector<1x10xf32>
    %12 = vector.broadcast %11 : vector<1x10xf32> to vector<64x10xf32>
    %13 = arith.addf %10, %12 : vector<64x10xf32>
    %c0_14 = arith.constant 0 : index
    %c0_15 = arith.constant 0 : index
    %14 = vector.load %arg8[%c0_14, %c0_15] : memref<48x64xf32, #tpu.memory_space<vmem>>, vector<48x64xf32>
    %cst_16 = arith.constant dense<0.000000e+00> : vector<64x64xf32>
    %15 = tpu.matmul %3, %14, %cst_16 {dimension_numbers = #tpu.dot_dimension_numbers<[1], [0], [0], [1], [0, 0, 1, 1], [], []>} : vector<64x48xf32>, vector<48x64xf32>, vector<64x64xf32> -> vector<64x64xf32>
    %c0_17 = arith.constant 0 : index
    %c0_18 = arith.constant 0 : index
    %16 = vector.load %arg9[%c0_17, %c0_18] : memref<1x64xf32, #tpu.memory_space<vmem>>, vector<1x64xf32>
    %17 = vector.broadcast %16 : vector<1x64xf32> to vector<64x64xf32>
    %18 = arith.addf %15, %17 : vector<64x64xf32>
    %19 = arith.mulf %8, %8 : vector<256x10xf32>
    %cst_19 = arith.constant dense<0.000000e+00> : vector<256xf32>
    %20 = vector.multi_reduction <add>, %19, %cst_19 [1] : vector<256x10xf32> to vector<256xf32>
    %21 = vector.shape_cast %20 : vector<256xf32> to vector<256x1xf32>
    %22 = math.sqrt %21 : vector<256x1xf32>
    %cst_20 = arith.constant 9.99999996E-13 : f32
    %23 = vector.broadcast %cst_20 : f32 to vector<256x1xf32>
    %24 = arith.maximumf %22, %23 : vector<256x1xf32>
    %25 = tpu.reciprocal %24 : vector<256x1xf32> -> vector<256x1xf32>
    %26 = arith.mulf %13, %13 : vector<64x10xf32>
    %cst_21 = arith.constant dense<0.000000e+00> : vector<64xf32>
    %27 = vector.multi_reduction <add>, %26, %cst_21 [1] : vector<64x10xf32> to vector<64xf32>
    %28 = vector.shape_cast %27 : vector<64xf32> to vector<64x1xf32>
    %29 = math.sqrt %28 : vector<64x1xf32>
    %cst_22 = arith.constant 9.99999996E-13 : f32
    %30 = vector.broadcast %cst_22 : f32 to vector<64x1xf32>
    %31 = arith.maximumf %29, %30 : vector<64x1xf32>
    %32 = tpu.reciprocal %31 : vector<64x1xf32> -> vector<64x1xf32>
    %33 = vector.broadcast %25 : vector<256x1xf32> to vector<256x10xf32>
    %34 = arith.mulf %8, %33 : vector<256x10xf32>
    %35 = vector.broadcast %32 : vector<64x1xf32> to vector<64x10xf32>
    %36 = arith.mulf %13, %35 : vector<64x10xf32>
    %c0_23 = arith.constant 0 : index
    %c0_24 = arith.constant 0 : index
    %37 = vector.load %arg10[%c0_23, %c0_24] : memref<64x1xf32, #tpu.memory_space<vmem>>, vector<64x1xf32>
    %38 = vector.broadcast %37 : vector<64x1xf32> to vector<64x10xf32>
    %39 = arith.mulf %36, %38 : vector<64x10xf32>
    %cst_25 = arith.constant dense<0.000000e+00> : vector<256x64xf32>
    %40 = tpu.matmul %34, %39, %cst_25 {dimension_numbers = #tpu.dot_dimension_numbers<[1], [1], [0], [0], [0, 0, 1, 0], [], []>} : vector<256x10xf32>, vector<64x10xf32>, vector<256x64xf32> -> vector<256x64xf32>
    %cst_26 = arith.constant dense<0xFF800000> : vector<256xf32>
    %41 = vector.multi_reduction <maximumf>, %40, %cst_26 [1] : vector<256x64xf32> to vector<256xf32>
    %42 = vector.shape_cast %41 : vector<256xf32> to vector<256x1xf32>
    %43 = vector.broadcast %42 : vector<256x1xf32> to vector<256x64xf32>
    %44 = arith.subf %40, %43 : vector<256x64xf32>
    %45 = math.exp %44 : vector<256x64xf32>
    %cst_27 = arith.constant dense<0.000000e+00> : vector<256xf32>
    %46 = vector.multi_reduction <add>, %45, %cst_27 [1] : vector<256x64xf32> to vector<256xf32>
    %47 = vector.shape_cast %46 : vector<256xf32> to vector<256x1xf32>
    %48 = tpu.reciprocal %47 : vector<256x1xf32> -> vector<256x1xf32>
    %49 = vector.broadcast %48 : vector<256x1xf32> to vector<256x64xf32>
    %50 = arith.mulf %45, %49 : vector<256x64xf32>
    %cst_28 = arith.constant dense<0.000000e+00> : vector<256x64xf32>
    %51 = tpu.matmul %50, %18, %cst_28 {dimension_numbers = #tpu.dot_dimension_numbers<[1], [0], [0], [1], [0, 0, 1, 1], [], []>} : vector<256x64xf32>, vector<64x64xf32>, vector<256x64xf32> -> vector<256x64xf32>
    %52 = tpu.concatenate %51, %50 in 1 : vector<256x64xf32>, vector<256x64xf32> -> vector<256x128xf32>
    %c0_29 = arith.constant 0 : index
    %c0_30 = arith.constant 0 : index
    %c0_31 = arith.constant 0 : index
    %53 = vector.load %arg11[%c0_29, %c0_30, %c0_31] : memref<1x256x128xf32, #tpu.memory_space<vmem>>, vector<1x256x128xf32>
    %54 = vector.shape_cast %53 : vector<1x256x128xf32> to vector<256x128xf32>
    %55 = vector.shape_cast %52 : vector<256x128xf32> to vector<1x256x128xf32>
    tpu.vector_store %arg11[%c0_29, %c0_30, %c0_31], %55 {strides = array<i32>} : memref<1x256x128xf32, #tpu.memory_space<vmem>>, vector<1x256x128xf32>,
    return
  }
  func.func @transform_0(%arg0: i32, %arg1: i32) -> (i32, i32, i32) {
    %c0_i32 = arith.constant 0 : i32
    %c0_i32_0 = arith.constant 0 : i32
    return %arg0, %arg1, %c0_i32 : i32, i32, i32
  }
  func.func @transform_1(%arg0: i32, %arg1: i32) -> (i32, i32, i32) {
    %c0_i32 = arith.constant 0 : i32
    %c0_i32_0 = arith.constant 0 : i32
    %c0_i32_1 = arith.constant 0 : i32
    return %arg0, %c0_i32, %c0_i32_0 : i32, i32, i32
  }
  func.func @transform_2(%arg0: i32, %arg1: i32) -> (i32, i32) {
    %c0_i32 = arith.constant 0 : i32
    %c0_i32_0 = arith.constant 0 : i32
    %c0_i32_1 = arith.constant 0 : i32
    return %c0_i32, %c0_i32_0 : i32, i32
  }
  func.func @transform_3(%arg0: i32, %arg1: i32) -> (i32, i32) {
    %c0_i32 = arith.constant 0 : i32
    %c0_i32_0 = arith.constant 0 : i32
    %c0_i32_1 = arith.constant 0 : i32
    return %c0_i32, %c0_i32_0 : i32, i32
  }
  func.func @transform_4(%arg0: i32, %arg1: i32) -> (i32, i32) {
    %c0_i32 = arith.constant 0 : i32
    %c0_i32_0 = arith.constant 0 : i32
    %c0_i32_1 = arith.constant 0 : i32
    return %c0_i32, %c0_i32_0 : i32, i32
  }
  func.func @transform_5(%arg0: i32, %arg1: i32) -> (i32, i32) {
    %c0_i32 = arith.constant 0 : i32
    %c0_i32_0 = arith.constant 0 : i32
    %c0_i32_1 = arith.constant 0 : i32
    return %c0_i32, %c0_i32_0 : i32, i32
  }
  func.func @transform_6(%arg0: i32, %arg1: i32) -> (i32, i32) {
    %c0_i32 = arith.constant 0 : i32
    %c0_i32_0 = arith.constant 0 : i32
    %c0_i32_1 = arith.constant 0 : i32
    return %c0_i32, %c0_i32_0 : i32, i32
  }
  func.func @transform_7(%arg0: i32, %arg1: i32) -> (i32, i32) {
    %c0_i32 = arith.constant 0 : i32
    %c0_i32_0 = arith.constant 0 : i32
    %c0_i32_1 = arith.constant 0 : i32
    return %c0_i32, %c0_i32_0 : i32, i32
  }
  func.func @transform_8(%arg0: i32, %arg1: i32) -> (i32, i32) {
    %c0_i32 = arith.constant 0 : i32
    %c0_i32_0 = arith.constant 0 : i32
    %c0_i32_1 = arith.constant 0 : i32
    return %c0_i32, %c0_i32_0 : i32, i32
  }
  func.func @transform_9(%arg0: i32, %arg1: i32) -> (i32, i32, i32) {
    %c0_i32 = arith.constant 0 : i32
    %c0_i32_0 = arith.constant 0 : i32
    return %arg0, %arg1, %c0_i32 : i32, i32, i32
  }
}

</mosaic_0001>

<llo_original>
// kernel: tpu_custom_call.1
$region0: #{tpu_custom_call.1}
  #allocation0 [shape = 'u32[]', space=smem, size = 0x4, offset = 0x4, fixed_abs, tag = 'smem constant byte address 0x4 - core index']
  #allocation1 [shape = 'u32[144,128]{1,0:T(1,128)}', space=vmem, size = 0x12000, scoped, tag = 'internal scratch']
  %s0 = inlined_call_operand.vmem [shape: f32[2,256,48], index: 0, kind: input, shape index: {}]
  %s1 = inlined_call_operand.vmem [shape: f32[2,64,48], index: 1, kind: input, shape index: {}]
  %s2 = inlined_call_operand.vmem [shape: f32[48,10], index: 2, kind: input, shape index: {}]
  %s3 = inlined_call_operand.vmem [shape: f32[1,10], index: 3, kind: input, shape index: {}]
  %s4 = inlined_call_operand.vmem [shape: f32[48,10], index: 4, kind: input, shape index: {}]
  %s5 = inlined_call_operand.vmem [shape: f32[1,10], index: 5, kind: input, shape index: {}]
  %s6 = inlined_call_operand.vmem [shape: f32[48,64], index: 6, kind: input, shape index: {}]
  %s7 = inlined_call_operand.vmem [shape: f32[1,64], index: 7, kind: input, shape index: {}]
  %s8 = inlined_call_operand.vmem [shape: f32[64,1], index: 8, kind: input, shape index: {}]
  %s9 = inlined_call_operand.hbm [shape: f32[2,256,128], index: 9, kind: output, shape index: {}]
  %s10 = sld [smem:[#allocation0]]
  $region69: #{tpu_custom_call.1} parent=0
    _
  %s12 = ssub.s32 1, %s10
  %s13 = scalar_select 0, %s12, %s10
  $region1: #{tpu_custom_call.1} parent=0
    #allocation2 [shape = 'u8[262144]{0}', space=vmem, size = 0x40000, scoped, tag = 'output window, operand 0']
    #allocation3 [shape = 's32[2]{0}', space=sflag, size = 0x8, scoped, tag = 'scoped memory for tpu_custom_call.1']
    %14 = vsyncpa [#allocation3], 0
    %s15 = scalar_lea.sflag [#allocation3], 1
    %16 = vsyncpa %s15, 0
    loop: start=0, step=1, limit=4
    $region2: #{tpu_custom_call.1} parent=1 // loop_pre_header
      _
    $region3: #{tpu_custom_call.1} parent=1 // loop_header
      %s18 = sphi 0, %s22
      %p19 = scmp.ge.s32.totalorder %s18, 4
      %s25 = sphi 0, %s37
      %s26 = sphi 0, %s33
      %s27 = sphi 0, %s25
      %s28 = sphi 0, %s26
      %s29 = sphi 0, %s27
      %s30 = sphi 0, %s28
      %s42 = sphi 0, %s44
      %s45 = sphi 0, %s42
      %s46 = sphi 0, %s45
      %s62 = sphi 0, %s46
      %s68 = sphi 0, %s70
      %s71 = sphi 0, %s68
      %s72 = sphi 0, %s71
      %s88 = sphi 0, %s72
      %s92 = sphi 0, %s92
      %s94 = sphi 0, %s92
      %s95 = sphi 0, %s94
      %s109 = sphi 0, %s95
      %s113 = sphi 0, %s113
      %s115 = sphi 0, %s113
      %s116 = sphi 0, %s115
      %s130 = sphi 0, %s116
      %s134 = sphi 0, %s134
      %s136 = sphi 0, %s134
      %s137 = sphi 0, %s136
      %s151 = sphi 0, %s137
      %s155 = sphi 0, %s155
      %s157 = sphi 0, %s155
      %s158 = sphi 0, %s157
      %s172 = sphi 0, %s158
      %s176 = sphi 0, %s176
      %s178 = sphi 0, %s176
      %s179 = sphi 0, %s178
      %s193 = sphi 0, %s179
      %s197 = sphi 0, %s197
      %s199 = sphi 0, %s197
      %s200 = sphi 0, %s199
      %s214 = sphi 0, %s200
      %s218 = sphi 0, %s218
      %s220 = sphi 0, %s218
      %s221 = sphi 0, %s220
      %s235 = sphi 0, %s221
      %s243 = sphi 0, %s245
      %s246 = sphi 0, %s243
      %s247 = sphi 0, %s246
      %s263 = sphi 0, %s247
    $region4: #{tpu_custom_call.1} parent=1 // loop_header_branch
      %21 = sbr.rel (%p19) target = $region8
    $region5: #{tpu_custom_call.1} parent=1 // loop_body
      %s23 = ssub.s32 %s18, 1
      %s24 = ssub.s32 %s18, 2
      %s31 = sadd.s32 1, %s26
      %p32 = scmp.ge.s32.totalorder %s31, 1
      %s33 = scalar_select %p32, 0, %s31
      %s34 = sadd.s32 1, %s25
      %s35 = scalar_select %p32, %s34, %s25
      %p36 = scmp.ge.s32.totalorder %s35, 2
      %s37 = scalar_select %p36, 0, %s35
      %s38 = ssub.s32 %s25, %s37
      %s39 = ssub.s32 %s26, %s33
      %s40 = sor.u32 %s38, %s39
      %p41 = scmp.eq.s32.totalorder %s40, 0
      %s43 = sadd.s32 %s42, 1
      %s44 = scalar_select %p41, %s42, %s43
      %p47 = pneg %p41
      %p48 = scmp.eq.s32.totalorder %s18, 1
      %p49 = por %p47, %p48
      %p50 = scmp.ne.s32.totalorder %s42, %s45
      %p51 = scmp.eq.s32.totalorder %s18, 0
      %p52 = por %p50, %p51
      %p53 = scmp.ne.s32.totalorder %s42, %s45
      %p54 = scmp.eq.s32.totalorder %s23, 1
      %p55 = por %p53, %p54
      %p56 = scmp.ne.s32.totalorder %s45, %s46
      %p57 = scmp.eq.s32.totalorder %s23, 0
      %p58 = por %p56, %p57
      %p59 = scmp.ne.s32.totalorder %s45, %s46
      %p60 = scmp.eq.s32.totalorder %s24, 1
      %p61 = por %p59, %p60
      %p63 = scmp.ne.s32.totalorder %s46, %s62
      %p64 = scmp.eq.s32.totalorder %s24, 0
      %p65 = por %p63, %p64
      %s66 = ssub.s32 %s25, %s37
      %p67 = scmp.eq.s32.totalorder %s66, 0
      %s69 = sadd.s32 %s68, 1
      %s70 = scalar_select %p67, %s68, %s69
      %p73 = pneg %p67
      %p74 = scmp.eq.s32.totalorder %s18, 1
      %p75 = por %p73, %p74
      %p76 = scmp.ne.s32.totalorder %s68, %s71
      %p77 = scmp.eq.s32.totalorder %s18, 0
      %p78 = por %p76, %p77
      %p79 = scmp.ne.s32.totalorder %s68, %s71
      %p80 = scmp.eq.s32.totalorder %s23, 1
      %p81 = por %p79, %p80
      %p82 = scmp.ne.s32.totalorder %s71, %s72
      %p83 = scmp.eq.s32.totalorder %s23, 0
      %p84 = por %p82, %p83
      %p85 = scmp.ne.s32.totalorder %s71, %s72
      %p86 = scmp.eq.s32.totalorder %s24, 1
      %p87 = por %p85, %p86
      %p89 = scmp.ne.s32.totalorder %s72, %s88
      %p90 = scmp.eq.s32.totalorder %s24, 0
      %p91 = por %p89, %p90
      %s93 = sadd.s32 %s92, 1
      %p96 = scmp.eq.s32.totalorder %s18, 1
      %p97 = scmp.ne.s32.totalorder %s92, %s94
      %p98 = scmp.eq.s32.totalorder %s18, 0
      %p99 = por %p97, %p98
      %p100 = scmp.ne.s32.totalorder %s92, %s94
      %p101 = scmp.eq.s32.totalorder %s23, 1
      %p102 = por %p100, %p101
      %p103 = scmp.ne.s32.totalorder %s94, %s95
      %p104 = scmp.eq.s32.totalorder %s23, 0
      %p105 = por %p103, %p104
      %p106 = scmp.ne.s32.totalorder %s94, %s95
      %p107 = scmp.eq.s32.totalorder %s24, 1
      %p108 = por %p106, %p107
      %p110 = scmp.ne.s32.totalorder %s95, %s109
      %p111 = scmp.eq.s32.totalorder %s24, 0
      %p112 = por %p110, %p111
      %s114 = sadd.s32 %s113, 1
      %p117 = scmp.eq.s32.totalorder %s18, 1
      %p118 = scmp.ne.s32.totalorder %s113, %s115
      %p119 = scmp.eq.s32.totalorder %s18, 0
      %p120 = por %p118, %p119
      %p121 = scmp.ne.s32.totalorder %s113, %s115
      %p122 = scmp.eq.s32.totalorder %s23, 1
      %p123 = por %p121, %p122
      %p124 = scmp.ne.s32.totalorder %s115, %s116
      %p125 = scmp.eq.s32.totalorder %s23, 0
      %p126 = por %p124, %p125
      %p127 = scmp.ne.s32.totalorder %s115, %s116
      %p128 = scmp.eq.s32.totalorder %s24, 1
      %p129 = por %p127, %p128
      %p131 = scmp.ne.s32.totalorder %s116, %s130
      %p132 = scmp.eq.s32.totalorder %s24, 0
      %p133 = por %p131, %p132
      %s135 = sadd.s32 %s134, 1
      %p138 = scmp.eq.s32.totalorder %s18, 1
      %p139 = scmp.ne.s32.totalorder %s134, %s136
      %p140 = scmp.eq.s32.totalorder %s18, 0
      %p141 = por %p139, %p140
      %p142 = scmp.ne.s32.totalorder %s134, %s136
      %p143 = scmp.eq.s32.totalorder %s23, 1
      %p144 = por %p142, %p143
      %p145 = scmp.ne.s32.totalorder %s136, %s137
      %p146 = scmp.eq.s32.totalorder %s23, 0
      %p147 = por %p145, %p146
      %p148 = scmp.ne.s32.totalorder %s136, %s137
      %p149 = scmp.eq.s32.totalorder %s24, 1
      %p150 = por %p148, %p149
      %p152 = scmp.ne.s32.totalorder %s137, %s151
      %p153 = scmp.eq.s32.totalorder %s24, 0
      %p154 = por %p152, %p153
      %s156 = sadd.s32 %s155, 1
      %p159 = scmp.eq.s32.totalorder %s18, 1
      %p160 = scmp.ne.s32.totalorder %s155, %s157
      %p161 = scmp.eq.s32.totalorder %s18, 0
      %p162 = por %p160, %p161
      %p163 = scmp.ne.s32.totalorder %s155, %s157
      %p164 = scmp.eq.s32.totalorder %s23, 1
      %p165 = por %p163, %p164
      %p166 = scmp.ne.s32.totalorder %s157, %s158
      %p167 = scmp.eq.s32.totalorder %s23, 0
      %p168 = por %p166, %p167
      %p169 = scmp.ne.s32.totalorder %s157, %s158
      %p170 = scmp.eq.s32.totalorder %s24, 1
      %p171 = por %p169, %p170
      %p173 = scmp.ne.s32.totalorder %s158, %s172
      %p174 = scmp.eq.s32.totalorder %s24, 0
      %p175 = por %p173, %p174
      %s177 = sadd.s32 %s176, 1
      %p180 = scmp.eq.s32.totalorder %s18, 1
      %p181 = scmp.ne.s32.totalorder %s176, %s178
      %p182 = scmp.eq.s32.totalorder %s18, 0
      %p183 = por %p181, %p182
      %p184 = scmp.ne.s32.totalorder %s176, %s178
      %p185 = scmp.eq.s32.totalorder %s23, 1
      %p186 = por %p184, %p185
      %p187 = scmp.ne.s32.totalorder %s178, %s179
      %p188 = scmp.eq.s32.totalorder %s23, 0
      %p189 = por %p187, %p188
      %p190 = scmp.ne.s32.totalorder %s178, %s179
      %p191 = scmp.eq.s32.totalorder %s24, 1
      %p192 = por %p190, %p191
      %p194 = scmp.ne.s32.totalorder %s179, %s193
      %p195 = scmp.eq.s32.totalorder %s24, 0
      %p196 = por %p194, %p195
      %s198 = sadd.s32 %s197, 1
      %p201 = scmp.eq.s32.totalorder %s18, 1
      %p202 = scmp.ne.s32.totalorder %s197, %s199
      %p203 = scmp.eq.s32.totalorder %s18, 0
      %p204 = por %p202, %p203
      %p205 = scmp.ne.s32.totalorder %s197, %s199
      %p206 = scmp.eq.s32.totalorder %s23, 1
      %p207 = por %p205, %p206
      %p208 = scmp.ne.s32.totalorder %s199, %s200
      %p209 = scmp.eq.s32.totalorder %s23, 0
      %p210 = por %p208, %p209
      %p211 = scmp.ne.s32.totalorder %s199, %s200
      %p212 = scmp.eq.s32.totalorder %s24, 1
      %p213 = por %p211, %p212
      %p215 = scmp.ne.s32.totalorder %s200, %s214
      %p216 = scmp.eq.s32.totalorder %s24, 0
      %p217 = por %p215, %p216
      %s219 = sadd.s32 %s218, 1
      %p222 = scmp.eq.s32.totalorder %s18, 1
      %p223 = scmp.ne.s32.totalorder %s218, %s220
      %p224 = scmp.eq.s32.totalorder %s18, 0
      %p225 = por %p223, %p224
      %p226 = scmp.ne.s32.totalorder %s218, %s220
      %p227 = scmp.eq.s32.totalorder %s23, 1
      %p228 = por %p226, %p227
      %p229 = scmp.ne.s32.totalorder %s220, %s221
      %p230 = scmp.eq.s32.totalorder %s23, 0
      %p231 = por %p229, %p230
      %p232 = scmp.ne.s32.totalorder %s220, %s221
      %p233 = scmp.eq.s32.totalorder %s24, 1
      %p234 = por %p232, %p233
      %p236 = scmp.ne.s32.totalorder %s221, %s235
      %p237 = scmp.eq.s32.totalorder %s24, 0
      %p238 = por %p236, %p237
      %s239 = ssub.s32 %s25, %s37
      %s240 = ssub.s32 %s26, %s33
      %s241 = sor.u32 %s239, %s240
      %p242 = scmp.eq.s32.totalorder %s241, 0
      %s244 = sadd.s32 %s243, 1
      %s245 = scalar_select %p242, %s243, %s244
      %p248 = pneg %p242
      %p249 = scmp.eq.s32.totalorder %s18, 1
      %p250 = por %p248, %p249
      %p251 = scmp.ne.s32.totalorder %s243, %s246
      %p252 = scmp.eq.s32.totalorder %s18, 0
      %p253 = por %p251, %p252
      %p254 = scmp.ne.s32.totalorder %s243, %s246
      %p255 = scmp.eq.s32.totalorder %s23, 1
      %p256 = por %p254, %p255
      %p257 = scmp.ne.s32.totalorder %s246, %s247
      %p258 = scmp.eq.s32.totalorder %s23, 0
      %p259 = por %p257, %p258
      %p260 = scmp.ne.s32.totalorder %s246, %s247
      %p261 = scmp.eq.s32.totalorder %s24, 1
      %p262 = por %p260, %p261
      %p264 = scmp.ne.s32.totalorder %s247, %s263
      %p265 = scmp.eq.s32.totalorder %s24, 0
      %p266 = por %p264, %p265
      %p267 = scmp.le.s32.totalorder 1, %s18
      %p268 = scmp.lt.s32.totalorder %s18, 3
      %p269 = pnand %p267, %p268
      %p270 = pneg %p269
      // Predicated region
      $region9: #{tpu_custom_call.1} parent=5 // pred_check
        _
      $region10: #{tpu_custom_call.1} parent=5 // pred_check_branch
        %272 = sbr.rel (%p269) target = $region12
      $region11: #{tpu_custom_call.1} parent=5 // pred_region
        %s273 = ssub.s32 %s18, 1
        // Predicated region
        $region13: #{tpu_custom_call.1} parent=11 // pred_check
          %p274 = pneg %p105
        $region14: #{tpu_custom_call.1} parent=11 // pred_check_branch
          %276 = sbr.rel (%p274) target = $region16
        $region15: #{tpu_custom_call.1} parent=11 // pred_region
          _
        $region16: #{tpu_custom_call.1} parent=11 // pred_fallthru
          _
        // Predicated region
        $region17: #{tpu_custom_call.1} parent=11 // pred_check
          %p277 = pneg %p126
        $region18: #{tpu_custom_call.1} parent=11 // pred_check_branch
          %279 = sbr.rel (%p277) target = $region20
        $region19: #{tpu_custom_call.1} parent=11 // pred_region
          _
        $region20: #{tpu_custom_call.1} parent=11 // pred_fallthru
          _
        // Predicated region
        $region21: #{tpu_custom_call.1} parent=11 // pred_check
          %p280 = pneg %p147
        $region22: #{tpu_custom_call.1} parent=11 // pred_check_branch
          %282 = sbr.rel (%p280) target = $region24
        $region23: #{tpu_custom_call.1} parent=11 // pred_region
          _
        $region24: #{tpu_custom_call.1} parent=11 // pred_fallthru
          _
        // Predicated region
        $region25: #{tpu_custom_call.1} parent=11 // pred_check
          %p283 = pneg %p168
        $region26: #{tpu_custom_call.1} parent=11 // pred_check_branch
          %285 = sbr.rel (%p283) target = $region28
        $region27: #{tpu_custom_call.1} parent=11 // pred_region
          _
        $region28: #{tpu_custom_call.1} parent=11 // pred_fallthru
          _
        // Predicated region
        $region29: #{tpu_custom_call.1} parent=11 // pred_check
          %p286 = pneg %p189
        $region30: #{tpu_custom_call.1} parent=11 // pred_check_branch
          %288 = sbr.rel (%p286) target = $region32
        $region31: #{tpu_custom_call.1} parent=11 // pred_region
          _
        $region32: #{tpu_custom_call.1} parent=11 // pred_fallthru
          _
        // Predicated region
        $region33: #{tpu_custom_call.1} parent=11 // pred_check
          %p289 = pneg %p210
        $region34: #{tpu_custom_call.1} parent=11 // pred_check_branch
          %291 = sbr.rel (%p289) target = $region36
        $region35: #{tpu_custom_call.1} parent=11 // pred_region
          _
        $region36: #{tpu_custom_call.1} parent=11 // pred_fallthru
          _
        // Predicated region
        $region37: #{tpu_custom_call.1} parent=11 // pred_check
          %p292 = pneg %p231
        $region38: #{tpu_custom_call.1} parent=11 // pred_check_branch
          %294 = sbr.rel (%p292) target = $region40
        $region39: #{tpu_custom_call.1} parent=11 // pred_region
          _
        $region40: #{tpu_custom_call.1} parent=11 // pred_fallthru
          _
      $region12: #{tpu_custom_call.1} parent=5 // pred_fallthru
        _
      %p295 = scmp.lt.s32.totalorder %s18, 2
      // Predicated region
      $region41: #{tpu_custom_call.1} parent=5 // pred_check
        %p296 = pneg %p295
      $region42: #{tpu_custom_call.1} parent=5 // pred_check_branch
        %298 = sbr.rel (%p296) target = $region44
      $region43: #{tpu_custom_call.1} parent=5 // pred_region
        // Predicated region
        $region45: #{tpu_custom_call.1} parent=43 // pred_check
          %p299 = pneg %p52
        $region46: #{tpu_custom_call.1} parent=43 // pred_check_branch
          %301 = sbr.rel (%p299) target = $region48
        $region47: #{tpu_custom_call.1} parent=43 // pred_region
          %s302 = smul.u32 32, %s26
          %p303 = scmp.lt.s32.totalorder %s25, 1
          %s304 = scalar_select %p303, %s25, 1
          %p305 = scmp.lt.s32.totalorder %s302, 31
          %s306 = scalar_select %p305, %s302, 31
          %s307 = smul.addr %s304, 32
          %s308 = sadd.s32 %s306, %s307
          %s309 = smul.addr %s308, 8
          %s310 = scalar_lea.vmem %s0, %s309
          %s311 = smul.u32 32, %s26
        $region48: #{tpu_custom_call.1} parent=43 // pred_fallthru
          _
        // Predicated region
        $region49: #{tpu_custom_call.1} parent=43 // pred_check
          %p312 = pneg %p78
        $region50: #{tpu_custom_call.1} parent=43 // pred_check_branch
          %314 = sbr.rel (%p312) target = $region52
        $region51: #{tpu_custom_call.1} parent=43 // pred_region
          %p315 = scmp.lt.s32.totalorder %s25, 1
          %s316 = scalar_select %p315, %s25, 1
          %s317 = smul.addr %s316, 8
          %s318 = smul.addr %s317, 8
          %s319 = scalar_lea.vmem %s1, %s318
        $region52: #{tpu_custom_call.1} parent=43 // pred_fallthru
          _
      $region44: #{tpu_custom_call.1} parent=5 // pred_fallthru
        _
      %p320 = scmp.le.s32.totalorder 1, %s18
      %p321 = scmp.lt.s32.totalorder %s18, 3
      %p322 = pnand %p320, %p321
      %p323 = pneg %p322
      // Predicated region
      $region53: #{tpu_custom_call.1} parent=5 // pred_check
        _
      $region54: #{tpu_custom_call.1} parent=5 // pred_check_branch
        %325 = sbr.rel (%p322) target = $region56
      $region55: #{tpu_custom_call.1} parent=5 // pred_region
        %s326 = ssub.s32 %s18, 1
        %s327 = smul.u32 32, %s28
        %p328 = scmp.lt.s32.totalorder %s27, 1
        %s329 = scalar_select %p328, %s27, 1
        %p330 = scmp.lt.s32.totalorder %s327, 31
        %s331 = scalar_select %p330, %s327, 31
        %s332 = smul.addr %s329, 32
        %s333 = sadd.s32 %s331, %s332
        %s334 = smul.addr %s333, 8
        %s335 = scalar_lea.vmem %s0, %s334
        %p336 = pneg %p58
        %p337 = pneg %p55
        %p338 = scmp.lt.s32.totalorder %s27, 1
        %s339 = scalar_select %p338, %s27, 1
        %s340 = smul.addr %s339, 8
        %s341 = smul.addr %s340, 8
        %s342 = scalar_lea.vmem %s1, %s341
        %p343 = pneg %p84
        %p344 = pneg %p81
        %p345 = pneg %p105
        %p346 = pneg %p102
        %p347 = pneg %p126
        %p348 = pneg %p123
        %p349 = pneg %p147
        %p350 = pneg %p144
        %p351 = pneg %p168
        %p352 = pneg %p165
        %p353 = pneg %p189
        %p354 = pneg %p186
        %p355 = pneg %p210
        %p356 = pneg %p207
        %p357 = pneg %p231
        %p358 = pneg %p228
        %p359 = pneg %p259
        %p360 = pneg %p256
        %s361 = sand.u32 %s246, 1
        %s362 = scalar_lea.sflag [#allocation3], %s361
        %s363 = sand.u32 %s246, 1
        %s364 = smul.addr %s363, 256
        %s365 = scalar_lea.vmem [#allocation2], %s364
        %s366 = smul.u32 32, %s28
        %p367 = scmp.lt.s32.totalorder %s27, 1
        %s368 = scalar_select %p367, %s27, 1
        %p369 = scmp.lt.s32.totalorder %s366, 31
        %s370 = scalar_select %p369, %s366, 31
        %s371 = smul.addr %s368, 32
        %s372 = sadd.s32 %s370, %s371
        %s373 = smul.addr %s372, 8
        %s374 = scalar_lea.vmem %s0, %s373
        %s375 = smul.u32 32, %s28
        %p376 = scmp.lt.s32.totalorder %s27, 1
        %s377 = scalar_select %p376, %s27, 1
        %s378 = smul.addr %s377, 8
        %s379 = smul.addr %s378, 8
        %s380 = scalar_lea.vmem %s1, %s379
        %s381 = smul.u32 32, %s28
        %v382 = vld [vmem:[%s374] sm:$0xff]
        %v383 = vld [vmem:[%s374 + $0x8] sm:$0xff]
        %v384 = vld [vmem:[%s374 + $0x10] sm:$0xff]
        %v385 = vld [vmem:[%s374 + $0x18] sm:$0xff]
        %v386 = vld [vmem:[%s374 + $0x20] sm:$0xff]
        %v387 = vld [vmem:[%s374 + $0x28] sm:$0xff]
        %v388 = vld [vmem:[%s374 + $0x30] sm:$0xff]
        %v389 = vld [vmem:[%s374 + $0x38] sm:$0xff]
        %v390 = vld [vmem:[%s374 + $0x40] sm:$0xff]
        %v391 = vld [vmem:[%s374 + $0x48] sm:$0xff]
        %v392 = vld [vmem:[%s374 + $0x50] sm:$0xff]
        %v393 = vld [vmem:[%s374 + $0x58] sm:$0xff]
        %v394 = vld [vmem:[%s374 + $0x60] sm:$0xff]
        %v395 = vld [vmem:[%s374 + $0x68] sm:$0xff]
        %v396 = vld [vmem:[%s374 + $0x70] sm:$0xff]
        %v397 = vld [vmem:[%s374 + $0x78] sm:$0xff]
        %v398 = vld [vmem:[%s374 + $0x80] sm:$0xff]
        %v399 = vld [vmem:[%s374 + $0x88] sm:$0xff]
        %v400 = vld [vmem:[%s374 + $0x90] sm:$0xff]
        %v401 = vld [vmem:[%s374 + $0x98] sm:$0xff]
        %v402 = vld [vmem:[%s374 + $0xa0] sm:$0xff]
        %v403 = vld [vmem:[%s374 + $0xa8] sm:$0xff]
        %v404 = vld [vmem:[%s374 + $0xb0] sm:$0xff]
        %v405 = vld [vmem:[%s374 + $0xb8] sm:$0xff]
        %v406 = vld [vmem:[%s374 + $0xc0] sm:$0xff]
        %v407 = vld [vmem:[%s374 + $0xc8] sm:$0xff]
        %v408 = vld [vmem:[%s374 + $0xd0] sm:$0xff]
        %v409 = vld [vmem:[%s374 + $0xd8] sm:$0xff]
        %v410 = vld [vmem:[%s374 + $0xe0] sm:$0xff]
        %v411 = vld [vmem:[%s374 + $0xe8] sm:$0xff]
        %v412 = vld [vmem:[%s374 + $0xf0] sm:$0xff]
        %v413 = vld [vmem:[%s374 + $0xf8] sm:$0xff]
        %v414 = vld [vmem:[%s380] sm:$0xff]
        %v415 = vld [vmem:[%s380 + $0x8] sm:$0xff]
        %v416 = vld [vmem:[%s380 + $0x10] sm:$0xff]
        %v417 = vld [vmem:[%s380 + $0x18] sm:$0xff]
        %v418 = vld [vmem:[%s380 + $0x20] sm:$0xff]
        %v419 = vld [vmem:[%s380 + $0x28] sm:$0xff]
        %v420 = vld [vmem:[%s380 + $0x30] sm:$0xff]
        %v421 = vld [vmem:[%s380 + $0x38] sm:$0xff]
        %v422 = vld [vmem:[%s2] sm:$0xff]
        %v423 = vld [vmem:[%s2 + $0x8] sm:$0xff]
        %v424 = vld [vmem:[%s2 + $0x10] sm:$0xff]
        %v425 = vld [vmem:[%s2 + $0x18] sm:$0xff]
        %v426 = vld [vmem:[%s2 + $0x20] sm:$0xff]
        %v427 = vld [vmem:[%s2 + $0x28] sm:$0xff]
        %v428 = vld [vmem:[%s3] sm:$0x1]
        %v430 = vlaneseq
        %v431 = vshrl.u32 %v430, 7
        %v432 = vsub.s32 0, %v431
        %v433 = vrot.slane %v428, %v432
        %vm435 = vcmask 392192
        %v437 = vsel %vm435, %v382, 0
        %v440 = vsel %vm435, %v383, 0
        %v443 = vsel %vm435, %v384, 0
        %v446 = vsel %vm435, %v385, 0
        %v449 = vsel %vm435, %v386, 0
        %v452 = vsel %vm435, %v387, 0
        %v455 = vsel %vm435, %v388, 0
        %v458 = vsel %vm435, %v389, 0
        %v461 = vsel %vm435, %v390, 0
        %v464 = vsel %vm435, %v391, 0
        %v467 = vsel %vm435, %v392, 0
        %v470 = vsel %vm435, %v393, 0
        %v473 = vsel %vm435, %v394, 0
        %v476 = vsel %vm435, %v395, 0
        %v479 = vsel %vm435, %v396, 0
        %v482 = vsel %vm435, %v397, 0
        %v485 = vsel %vm435, %v398, 0
        %v488 = vsel %vm435, %v399, 0
        %v491 = vsel %vm435, %v400, 0
        %v494 = vsel %vm435, %v401, 0
        %v497 = vsel %vm435, %v402, 0
        %v500 = vsel %vm435, %v403, 0
        %v503 = vsel %vm435, %v404, 0
        %v506 = vsel %vm435, %v405, 0
        %v509 = vsel %vm435, %v406, 0
        %v512 = vsel %vm435, %v407, 0
        %v515 = vsel %vm435, %v408, 0
        %v518 = vsel %vm435, %v409, 0
        %v521 = vsel %vm435, %v410, 0
        %v524 = vsel %vm435, %v411, 0
        %v527 = vsel %vm435, %v412, 0
        %v530 = vsel %vm435, %v413, 0
        %532 = vmatprep.subr.mxu0 0.0
        %533 = vmatpush1.msra.mxu0 0.0
        %534 = vmatprep.subr.mxu0 0.0
        %535 = vmatpush1.msra.mxu0 0.0
        %536 = vmatprep.subr.mxu0 0.0
        %537 = vmatpush1.msra.mxu0 0.0
        %538 = vmatprep.subr.mxu0 0.0
        %539 = vmatpush1.msra.mxu0 0.0
        %540 = vmatprep.subr.mxu0 0.0
        %541 = vmatpush1.msra.mxu0 0.0
        %542 = vmatprep.subr.mxu0 0.0
        %543 = vmatpush1.msra.mxu0 0.0
        %544 = vmatprep.subr.mxu0 0.0
        %545 = vmatpush1.msra.mxu0 0.0
        %546 = vmatprep.subr.mxu0 0.0
        %547 = vmatpush1.msra.mxu0 0.0
        %548 = vmatprep.subr.mxu0 0.0
        %549 = vmatpush1.msra.mxu0 0.0
        %550 = vmatprep.subr.mxu0 0.0
        %551 = vmatpush1.msra.mxu0 0.0
        %552 = vmatprep.subr.mxu0 0.0
        %553 = vmatpush1.msra.mxu0 %v427
        %554 = vmatprep.subr.mxu0 0.0
        %555 = vmatpush1.msra.mxu0 %v426
        %556 = vmatprep.subr.mxu0 0.0
        %557 = vmatpush1.msra.mxu0 %v425
        %558 = vmatprep.subr.mxu0 0.0
        %559 = vmatpush1.msra.mxu0 %v424
        %560 = vmatprep.subr.mxu0 0.0
        %561 = vmatpush1.msra.mxu0 %v423
        %562 = vmatprep.subr.mxu0 0.0
        %563 = vmatpush1.msra.mxu0 %v422
        %564 = vmatprep.subr.mxu0 0.0
        %565 = vmatpush2.msra.mxu0 0.0
        %566 = vmatprep.subr.mxu0 0.0
        %567 = vmatpush2.msra.mxu0 0.0
        %568 = vmatprep.subr.mxu0 0.0
        %569 = vmatpush2.msra.mxu0 0.0
        %570 = vmatprep.subr.mxu0 0.0
        %571 = vmatpush2.msra.mxu0 0.0
        %572 = vmatprep.subr.mxu0 0.0
        %573 = vmatpush2.msra.mxu0 0.0
        %574 = vmatprep.subr.mxu0 0.0
        %575 = vmatpush2.msra.mxu0 0.0
        %576 = vmatprep.subr.mxu0 0.0
        %577 = vmatpush2.msra.mxu0 0.0
        %578 = vmatprep.subr.mxu0 0.0
        %579 = vmatpush2.msra.mxu0 0.0
        %580 = vmatprep.subr.mxu0 0.0
        %581 = vmatpush2.msra.mxu0 0.0
        %582 = vmatprep.subr.mxu0 0.0
        %583 = vmatpush2.msra.mxu0 0.0
        %584 = vmatprep.subr.mxu0 0.0
        %585 = vmatpush2.msra.mxu0 0.0
        %586 = vmatprep.subr.mxu0 0.0
        %587 = vmatpush2.msra.mxu0 0.0
        %588 = vmatprep.subr.mxu0 0.0
        %589 = vmatpush2.msra.mxu0 0.0
        %590 = vmatprep.subr.mxu0 0.0
        %591 = vmatpush2.msra.mxu0 0.0
        %592 = vmatprep.subr.mxu0 0.0
        %593 = vmatpush2.msra.mxu0 0.0
        %594 = vmatprep.subr.mxu0 0.0
        %595 = vmatpush2.msra.mxu0 0.0
        %596 = vmatprep.mubr.f32.mxu0 0.0
        %597 = vmatmul.mubr.f32.gmra.mxu0 %v437
        %v598 = vpop.f32.mrf.mxu0
        %v599 = vadd.f32 %v433, %v598
        %v600 = vpop.f32.mrf.mxu0
        %601 = vmatprep.mubr.f32.mxu0 0.0
        %602 = vmatmul.mubr.f32.gmra.mxu0 %v440
        %v603 = vpop.f32.mrf.mxu0
        %v604 = vadd.f32 %v433, %v603
        %v605 = vpop.f32.mrf.mxu0
        %606 = vmatprep.mubr.f32.mxu0 0.0
        %607 = vmatmul.mubr.f32.gmra.mxu0 %v443
        %v608 = vpop.f32.mrf.mxu0
        %v609 = vadd.f32 %v433, %v608
        %v610 = vpop.f32.mrf.mxu0
        %611 = vmatprep.mubr.f32.mxu0 0.0
        %612 = vmatmul.mubr.f32.gmra.mxu0 %v446
        %v613 = vpop.f32.mrf.mxu0
        %v614 = vadd.f32 %v433, %v613
        %v615 = vpop.f32.mrf.mxu0
        %616 = vmatprep.mubr.f32.mxu0 0.0
        %617 = vmatmul.mubr.f32.gmra.mxu0 %v449
        %v618 = vpop.f32.mrf.mxu0
        %v619 = vadd.f32 %v433, %v618
        %v620 = vpop.f32.mrf.mxu0
        %621 = vmatprep.mubr.f32.mxu0 0.0
        %622 = vmatmul.mubr.f32.gmra.mxu0 %v452
        %v623 = vpop.f32.mrf.mxu0
        %v624 = vadd.f32 %v433, %v623
        %v625 = vpop.f32.mrf.mxu0
        %626 = vmatprep.mubr.f32.mxu0 0.0
        %627 = vmatmul.mubr.f32.gmra.mxu0 %v455
        %v628 = vpop.f32.mrf.mxu0
        %v629 = vadd.f32 %v433, %v628
        %v630 = vpop.f32.mrf.mxu0
        %631 = vmatprep.mubr.f32.mxu0 0.0
        %632 = vmatmul.mubr.f32.gmra.mxu0 %v458
        %v633 = vpop.f32.mrf.mxu0
        %v634 = vadd.f32 %v433, %v633
        %v635 = vpop.f32.mrf.mxu0
        %636 = vmatprep.mubr.f32.mxu0 0.0
        %637 = vmatmul.mubr.f32.gmra.mxu0 %v461
        %v638 = vpop.f32.mrf.mxu0
        %v639 = vadd.f32 %v433, %v638
        %v640 = vpop.f32.mrf.mxu0
        %641 = vmatprep.mubr.f32.mxu0 0.0
        %642 = vmatmul.mubr.f32.gmra.mxu0 %v464
        %v643 = vpop.f32.mrf.mxu0
        %v644 = vadd.f32 %v433, %v643
        %v645 = vpop.f32.mrf.mxu0
        %646 = vmatprep.mubr.f32.mxu0 0.0
        %647 = vmatmul.mubr.f32.gmra.mxu0 %v467
        %v648 = vpop.f32.mrf.mxu0
        %v649 = vadd.f32 %v433, %v648
        %v650 = vpop.f32.mrf.mxu0
        %651 = vmatprep.mubr.f32.mxu0 0.0
        %652 = vmatmul.mubr.f32.gmra.mxu0 %v470
        %v653 = vpop.f32.mrf.mxu0
        %v654 = vadd.f32 %v433, %v653
        %v655 = vpop.f32.mrf.mxu0
        %656 = vmatprep.mubr.f32.mxu0 0.0
        %657 = vmatmul.mubr.f32.gmra.mxu0 %v473
        %v658 = vpop.f32.mrf.mxu0
        %v659 = vadd.f32 %v433, %v658
        %v660 = vpop.f32.mrf.mxu0
        %661 = vmatprep.mubr.f32.mxu0 0.0
        %662 = vmatmul.mubr.f32.gmra.mxu0 %v476
        %v663 = vpop.f32.mrf.mxu0
        %v664 = vadd.f32 %v433, %v663
        %v665 = vpop.f32.mrf.mxu0
        %666 = vmatprep.mubr.f32.mxu0 0.0
        %667 = vmatmul.mubr.f32.gmra.mxu0 %v479
        %v668 = vpop.f32.mrf.mxu0
        %v669 = vadd.f32 %v433, %v668
        %v670 = vpop.f32.mrf.mxu0
        %671 = vmatprep.mubr.f32.mxu0 0.0
        %672 = vmatmul.mubr.f32.gmra.mxu0 %v482
        %v673 = vpop.f32.mrf.mxu0
        %v674 = vadd.f32 %v433, %v673
        %v675 = vpop.f32.mrf.mxu0
        %676 = vmatprep.mubr.f32.mxu0 0.0
        %677 = vmatmul.mubr.f32.gmra.mxu0 %v485
        %v678 = vpop.f32.mrf.mxu0
        %v679 = vadd.f32 %v433, %v678
        %v680 = vpop.f32.mrf.mxu0
        %681 = vmatprep.mubr.f32.mxu0 0.0
        %682 = vmatmul.mubr.f32.gmra.mxu0 %v488
        %v683 = vpop.f32.mrf.mxu0
        %v684 = vadd.f32 %v433, %v683
        %v685 = vpop.f32.mrf.mxu0
        %686 = vmatprep.mubr.f32.mxu0 0.0
        %687 = vmatmul.mubr.f32.gmra.mxu0 %v491
        %v688 = vpop.f32.mrf.mxu0
        %v689 = vadd.f32 %v433, %v688
        %v690 = vpop.f32.mrf.mxu0
        %691 = vmatprep.mubr.f32.mxu0 0.0
        %692 = vmatmul.mubr.f32.gmra.mxu0 %v494
        %v693 = vpop.f32.mrf.mxu0
        %v694 = vadd.f32 %v433, %v693
        %v695 = vpop.f32.mrf.mxu0
        %696 = vmatprep.mubr.f32.mxu0 0.0
        %697 = vmatmul.mubr.f32.gmra.mxu0 %v497
        %v698 = vpop.f32.mrf.mxu0
        %v699 = vadd.f32 %v433, %v698
        %v700 = vpop.f32.mrf.mxu0
        %701 = vmatprep.mubr.f32.mxu0 0.0
        %702 = vmatmul.mubr.f32.gmra.mxu0 %v500
        %v703 = vpop.f32.mrf.mxu0
        %v704 = vadd.f32 %v433, %v703
        %v705 = vpop.f32.mrf.mxu0
        %706 = vmatprep.mubr.f32.mxu0 0.0
        %707 = vmatmul.mubr.f32.gmra.mxu0 %v503
        %v708 = vpop.f32.mrf.mxu0
        %v709 = vadd.f32 %v433, %v708
        %v710 = vpop.f32.mrf.mxu0
        %711 = vmatprep.mubr.f32.mxu0 0.0
        %712 = vmatmul.mubr.f32.gmra.mxu0 %v506
        %v713 = vpop.f32.mrf.mxu0
        %v714 = vadd.f32 %v433, %v713
        %v715 = vpop.f32.mrf.mxu0
        %716 = vmatprep.mubr.f32.mxu0 0.0
        %717 = vmatmul.mubr.f32.gmra.mxu0 %v509
        %v718 = vpop.f32.mrf.mxu0
        %v719 = vadd.f32 %v433, %v718
        %v720 = vpop.f32.mrf.mxu0
        %721 = vmatprep.mubr.f32.mxu0 0.0
        %722 = vmatmul.mubr.f32.gmra.mxu0 %v512
        %v723 = vpop.f32.mrf.mxu0
        %v724 = vadd.f32 %v433, %v723
        %v725 = vpop.f32.mrf.mxu0
        %726 = vmatprep.mubr.f32.mxu0 0.0
        %727 = vmatmul.mubr.f32.gmra.mxu0 %v515
        %v728 = vpop.f32.mrf.mxu0
        %v729 = vadd.f32 %v433, %v728
        %v730 = vpop.f32.mrf.mxu0
        %731 = vmatprep.mubr.f32.mxu0 0.0
        %732 = vmatmul.mubr.f32.gmra.mxu0 %v518
        %v733 = vpop.f32.mrf.mxu0
        %v734 = vadd.f32 %v433, %v733
        %v735 = vpop.f32.mrf.mxu0
        %736 = vmatprep.mubr.f32.mxu0 0.0
        %737 = vmatmul.mubr.f32.gmra.mxu0 %v521
        %v738 = vpop.f32.mrf.mxu0
        %v739 = vadd.f32 %v433, %v738
        %v740 = vpop.f32.mrf.mxu0
        %741 = vmatprep.mubr.f32.mxu0 0.0
        %742 = vmatmul.mubr.f32.gmra.mxu0 %v524
        %v743 = vpop.f32.mrf.mxu0
        %v744 = vadd.f32 %v433, %v743
        %v745 = vpop.f32.mrf.mxu0
        %746 = vmatprep.mubr.f32.mxu0 0.0
        %747 = vmatmul.mubr.f32.gmra.mxu0 %v527
        %v748 = vpop.f32.mrf.mxu0
        %v749 = vadd.f32 %v433, %v748
        %v750 = vpop.f32.mrf.mxu0
        %751 = vmatprep.mubr.f32.mxu0 0.0
        %752 = vmatmul.mubr.f32.gmra.mxu0 %v530
        %v753 = vpop.f32.mrf.mxu0
        %v754 = vadd.f32 %v433, %v753
        %v755 = vpop.f32.mrf.mxu0
        %756 = vdwg.mxu0
        %v757 = vld [vmem:[%s4] sm:$0xff]
        %v758 = vld [vmem:[%s4 + $0x8] sm:$0xff]
        %v759 = vld [vmem:[%s4 + $0x10] sm:$0xff]
        %v760 = vld [vmem:[%s4 + $0x18] sm:$0xff]
        %v761 = vld [vmem:[%s4 + $0x20] sm:$0xff]
        %v762 = vld [vmem:[%s4 + $0x28] sm:$0xff]
        %v763 = vld [vmem:[%s5] sm:$0x1]
        %v765 = vlaneseq
        %v766 = vshrl.u32 %v765, 7
        %v767 = vsub.s32 0, %v766
        %v768 = vrot.slane %v763, %v767
        %v771 = vsel %vm435, %v414, 0
        %v774 = vsel %vm435, %v415, 0
        %v777 = vsel %vm435, %v416, 0
        %v780 = vsel %vm435, %v417, 0
        %v783 = vsel %vm435, %v418, 0
        %v786 = vsel %vm435, %v419, 0
        %v789 = vsel %vm435, %v420, 0
        %v792 = vsel %vm435, %v421, 0
        %794 = vmatprep.subr.mxu0 0.0
        %795 = vmatpush1.msra.mxu0 0.0
        %796 = vmatprep.subr.mxu0 0.0
        %797 = vmatpush1.msra.mxu0 0.0
        %798 = vmatprep.subr.mxu0 0.0
        %799 = vmatpush1.msra.mxu0 0.0
        %800 = vmatprep.subr.mxu0 0.0
        %801 = vmatpush1.msra.mxu0 0.0
        %802 = vmatprep.subr.mxu0 0.0
        %803 = vmatpush1.msra.mxu0 0.0
        %804 = vmatprep.subr.mxu0 0.0
        %805 = vmatpush1.msra.mxu0 0.0
        %806 = vmatprep.subr.mxu0 0.0
        %807 = vmatpush1.msra.mxu0 0.0
        %808 = vmatprep.subr.mxu0 0.0
        %809 = vmatpush1.msra.mxu0 0.0
        %810 = vmatprep.subr.mxu0 0.0
        %811 = vmatpush1.msra.mxu0 0.0
        %812 = vmatprep.subr.mxu0 0.0
        %813 = vmatpush1.msra.mxu0 0.0
        %814 = vmatprep.subr.mxu0 0.0
        %815 = vmatpush1.msra.mxu0 %v762
        %816 = vmatprep.subr.mxu0 0.0
        %817 = vmatpush1.msra.mxu0 %v761
        %818 = vmatprep.subr.mxu0 0.0
        %819 = vmatpush1.msra.mxu0 %v760
        %820 = vmatprep.subr.mxu0 0.0
        %821 = vmatpush1.msra.mxu0 %v759
        %822 = vmatprep.subr.mxu0 0.0
        %823 = vmatpush1.msra.mxu0 %v758
        %824 = vmatprep.subr.mxu0 0.0
        %825 = vmatpush1.msra.mxu0 %v757
        %826 = vmatprep.subr.mxu0 0.0
        %827 = vmatpush2.msra.mxu0 0.0
        %828 = vmatprep.subr.mxu0 0.0
        %829 = vmatpush2.msra.mxu0 0.0
        %830 = vmatprep.subr.mxu0 0.0
        %831 = vmatpush2.msra.mxu0 0.0
        %832 = vmatprep.subr.mxu0 0.0
        %833 = vmatpush2.msra.mxu0 0.0
        %834 = vmatprep.subr.mxu0 0.0
        %835 = vmatpush2.msra.mxu0 0.0
        %836 = vmatprep.subr.mxu0 0.0
        %837 = vmatpush2.msra.mxu0 0.0
        %838 = vmatprep.subr.mxu0 0.0
        %839 = vmatpush2.msra.mxu0 0.0
        %840 = vmatprep.subr.mxu0 0.0
        %841 = vmatpush2.msra.mxu0 0.0
        %842 = vmatprep.subr.mxu0 0.0
        %843 = vmatpush2.msra.mxu0 0.0
        %844 = vmatprep.subr.mxu0 0.0
        %845 = vmatpush2.msra.mxu0 0.0
        %846 = vmatprep.subr.mxu0 0.0
        %847 = vmatpush2.msra.mxu0 0.0
        %848 = vmatprep.subr.mxu0 0.0
        %849 = vmatpush2.msra.mxu0 0.0
        %850 = vmatprep.subr.mxu0 0.0
        %851 = vmatpush2.msra.mxu0 0.0
        %852 = vmatprep.subr.mxu0 0.0
        %853 = vmatpush2.msra.mxu0 0.0
        %854 = vmatprep.subr.mxu0 0.0
        %855 = vmatpush2.msra.mxu0 0.0
        %856 = vmatprep.subr.mxu0 0.0
        %857 = vmatpush2.msra.mxu0 0.0
        %858 = vmatprep.mubr.f32.mxu0 0.0
        %859 = vmatmul.mubr.f32.gmra.mxu0 %v771
        %v860 = vpop.f32.mrf.mxu0
        %v861 = vadd.f32 %v768, %v860
        %v862 = vpop.f32.mrf.mxu0
        %863 = vmatprep.mubr.f32.mxu0 0.0
        %864 = vmatmul.mubr.f32.gmra.mxu0 %v774
        %v865 = vpop.f32.mrf.mxu0
        %v866 = vadd.f32 %v768, %v865
        %v867 = vpop.f32.mrf.mxu0
        %868 = vmatprep.mubr.f32.mxu0 0.0
        %869 = vmatmul.mubr.f32.gmra.mxu0 %v777
        %v870 = vpop.f32.mrf.mxu0
        %v871 = vadd.f32 %v768, %v870
        %v872 = vpop.f32.mrf.mxu0
        %873 = vmatprep.mubr.f32.mxu0 0.0
        %874 = vmatmul.mubr.f32.gmra.mxu0 %v780
        %v875 = vpop.f32.mrf.mxu0
        %v876 = vadd.f32 %v768, %v875
        %v877 = vpop.f32.mrf.mxu0
        %878 = vmatprep.mubr.f32.mxu0 0.0
        %879 = vmatmul.mubr.f32.gmra.mxu0 %v783
        %v880 = vpop.f32.mrf.mxu0
        %v881 = vadd.f32 %v768, %v880
        %v882 = vpop.f32.mrf.mxu0
        %883 = vmatprep.mubr.f32.mxu0 0.0
        %884 = vmatmul.mubr.f32.gmra.mxu0 %v786
        %v885 = vpop.f32.mrf.mxu0
        %v886 = vadd.f32 %v768, %v885
        %v887 = vpop.f32.mrf.mxu0
        %888 = vmatprep.mubr.f32.mxu0 0.0
        %889 = vmatmul.mubr.f32.gmra.mxu0 %v789
        %v890 = vpop.f32.mrf.mxu0
        %v891 = vadd.f32 %v768, %v890
        %v892 = vpop.f32.mrf.mxu0
        %893 = vmatprep.mubr.f32.mxu0 0.0
        %894 = vmatmul.mubr.f32.gmra.mxu0 %v792
        %v895 = vpop.f32.mrf.mxu0
        %v896 = vadd.f32 %v768, %v895
        %v897 = vpop.f32.mrf.mxu0
        %898 = vdwg.mxu0
        %v899 = vld [vmem:[%s6] sm:$0xff]
        %v900 = vld [vmem:[%s6 + $0x8] sm:$0xff]
        %v901 = vld [vmem:[%s6 + $0x10] sm:$0xff]
        %v902 = vld [vmem:[%s6 + $0x18] sm:$0xff]
        %v903 = vld [vmem:[%s6 + $0x20] sm:$0xff]
        %v904 = vld [vmem:[%s6 + $0x28] sm:$0xff]
        %v905 = vld [vmem:[%s7] sm:$0x1]
        %v907 = vlaneseq
        %v908 = vshrl.u32 %v907, 7
        %v909 = vsub.s32 0, %v908
        %v910 = vrot.slane %v905, %v909
        %912 = vmatprep.subr.mxu0 0.0
        %913 = vmatpush1.msra.mxu0 0.0
        %914 = vmatprep.subr.mxu0 0.0
        %915 = vmatpush1.msra.mxu0 0.0
        %916 = vmatprep.subr.mxu0 0.0
        %917 = vmatpush1.msra.mxu0 0.0
        %918 = vmatprep.subr.mxu0 0.0
        %919 = vmatpush1.msra.mxu0 0.0
        %920 = vmatprep.subr.mxu0 0.0
        %921 = vmatpush1.msra.mxu0 0.0
        %922 = vmatprep.subr.mxu0 0.0
        %923 = vmatpush1.msra.mxu0 0.0
        %924 = vmatprep.subr.mxu0 0.0
        %925 = vmatpush1.msra.mxu0 0.0
        %926 = vmatprep.subr.mxu0 0.0
        %927 = vmatpush1.msra.mxu0 0.0
        %928 = vmatprep.subr.mxu0 0.0
        %929 = vmatpush1.msra.mxu0 0.0
        %930 = vmatprep.subr.mxu0 0.0
        %931 = vmatpush1.msra.mxu0 0.0
        %932 = vmatprep.subr.mxu0 0.0
        %933 = vmatpush1.msra.mxu0 %v904
        %934 = vmatprep.subr.mxu0 0.0
        %935 = vmatpush1.msra.mxu0 %v903
        %936 = vmatprep.subr.mxu0 0.0
        %937 = vmatpush1.msra.mxu0 %v902
        %938 = vmatprep.subr.mxu0 0.0
        %939 = vmatpush1.msra.mxu0 %v901
        %940 = vmatprep.subr.mxu0 0.0
        %941 = vmatpush1.msra.mxu0 %v900
        %942 = vmatprep.subr.mxu0 0.0
        %943 = vmatpush1.msra.mxu0 %v899
        %944 = vmatprep.subr.mxu0 0.0
        %945 = vmatpush2.msra.mxu0 0.0
        %946 = vmatprep.subr.mxu0 0.0
        %947 = vmatpush2.msra.mxu0 0.0
        %948 = vmatprep.subr.mxu0 0.0
        %949 = vmatpush2.msra.mxu0 0.0
        %950 = vmatprep.subr.mxu0 0.0
        %951 = vmatpush2.msra.mxu0 0.0
        %952 = vmatprep.subr.mxu0 0.0
        %953 = vmatpush2.msra.mxu0 0.0
        %954 = vmatprep.subr.mxu0 0.0
        %955 = vmatpush2.msra.mxu0 0.0
        %956 = vmatprep.subr.mxu0 0.0
        %957 = vmatpush2.msra.mxu0 0.0
        %958 = vmatprep.subr.mxu0 0.0
        %959 = vmatpush2.msra.mxu0 0.0
        %960 = vmatprep.subr.mxu0 0.0
        %961 = vmatpush2.msra.mxu0 0.0
        %962 = vmatprep.subr.mxu0 0.0
        %963 = vmatpush2.msra.mxu0 0.0
        %964 = vmatprep.subr.mxu0 0.0
        %965 = vmatpush2.msra.mxu0 0.0
        %966 = vmatprep.subr.mxu0 0.0
        %967 = vmatpush2.msra.mxu0 0.0
        %968 = vmatprep.subr.mxu0 0.0
        %969 = vmatpush2.msra.mxu0 0.0
        %970 = vmatprep.subr.mxu0 0.0
        %971 = vmatpush2.msra.mxu0 0.0
        %972 = vmatprep.subr.mxu0 0.0
        %973 = vmatpush2.msra.mxu0 0.0
        %974 = vmatprep.subr.mxu0 0.0
        %975 = vmatpush2.msra.mxu0 0.0
        %976 = vmatprep.mubr.f32.mxu0 0.0
        %977 = vmatmul.mubr.f32.gmra.mxu0 %v771
        %v978 = vpop.f32.mrf.mxu0
        %v979 = vadd.f32 %v910, %v978
        %v980 = vpop.f32.mrf.mxu0
        %981 = vmatprep.mubr.f32.mxu0 0.0
        %982 = vmatmul.mubr.f32.gmra.mxu0 %v774
        %v983 = vpop.f32.mrf.mxu0
        %v984 = vadd.f32 %v910, %v983
        %v985 = vpop.f32.mrf.mxu0
        %986 = vmatprep.mubr.f32.mxu0 0.0
        %987 = vmatmul.mubr.f32.gmra.mxu0 %v777
        %v988 = vpop.f32.mrf.mxu0
        %v989 = vadd.f32 %v910, %v988
        %v990 = vpop.f32.mrf.mxu0
        %991 = vmatprep.mubr.f32.mxu0 0.0
        %992 = vmatmul.mubr.f32.gmra.mxu0 %v780
        %v993 = vpop.f32.mrf.mxu0
        %v994 = vadd.f32 %v910, %v993
        %v995 = vpop.f32.mrf.mxu0
        %996 = vmatprep.mubr.f32.mxu0 0.0
        %997 = vmatmul.mubr.f32.gmra.mxu0 %v783
        %v998 = vpop.f32.mrf.mxu0
        %v999 = vadd.f32 %v910, %v998
        %v1000 = vpop.f32.mrf.mxu0
        %1001 = vmatprep.mubr.f32.mxu0 0.0
        %1002 = vmatmul.mubr.f32.gmra.mxu0 %v786
        %v1003 = vpop.f32.mrf.mxu0
        %v1004 = vadd.f32 %v910, %v1003
        %v1005 = vpop.f32.mrf.mxu0
        %1006 = vmatprep.mubr.f32.mxu0 0.0
        %1007 = vmatmul.mubr.f32.gmra.mxu0 %v789
        %v1008 = vpop.f32.mrf.mxu0
        %v1009 = vadd.f32 %v910, %v1008
        %v1010 = vpop.f32.mrf.mxu0
        %1011 = vmatprep.mubr.f32.mxu0 0.0
        %1012 = vmatmul.mubr.f32.gmra.mxu0 %v792
        %v1013 = vpop.f32.mrf.mxu0
        %v1014 = vadd.f32 %v910, %v1013
        %v1015 = vpop.f32.mrf.mxu0
        %1016 = vdwg.mxu0
        %v1017 = vmul.f32 %v599, %v599
        %v1018 = vmul.f32 %v604, %v604
        %v1019 = vmul.f32 %v609, %v609
        %v1020 = vmul.f32 %v614, %v614
        %v1021 = vmul.f32 %v619, %v619
        %v1022 = vmul.f32 %v624, %v624
        %v1023 = vmul.f32 %v629, %v629
        %v1024 = vmul.f32 %v634, %v634
        %v1025 = vmul.f32 %v639, %v639
        %v1026 = vmul.f32 %v644, %v644
        %v1027 = vmul.f32 %v649, %v649
        %v1028 = vmul.f32 %v654, %v654
        %v1029 = vmul.f32 %v659, %v659
        %v1030 = vmul.f32 %v664, %v664
        %v1031 = vmul.f32 %v669, %v669
        %v1032 = vmul.f32 %v674, %v674
        %v1033 = vmul.f32 %v679, %v679
        %v1034 = vmul.f32 %v684, %v684
        %v1035 = vmul.f32 %v689, %v689
        %v1036 = vmul.f32 %v694, %v694
        %v1037 = vmul.f32 %v699, %v699
        %v1038 = vmul.f32 %v704, %v704
        %v1039 = vmul.f32 %v709, %v709
        %v1040 = vmul.f32 %v714, %v714
        %v1041 = vmul.f32 %v719, %v719
        %v1042 = vmul.f32 %v724, %v724
        %v1043 = vmul.f32 %v729, %v729
        %v1044 = vmul.f32 %v734, %v734
        %v1045 = vmul.f32 %v739, %v739
        %v1046 = vmul.f32 %v744, %v744
        %v1047 = vmul.f32 %v749, %v749
        %v1048 = vmul.f32 %v754, %v754
        %vm1049 = vcmask 80896
        %v1050 = vsel %vm1049, %v1017, 0.0
        %1051 = vadd.xlane.f32.xlu0 %v1050
        %v1052 = vpop.xlane.xlu0 %1051
        %v1053 = vsel %vm1049, %v1018, 0.0
        %1054 = vadd.xlane.f32.xlu0 %v1053
        %v1055 = vpop.xlane.xlu0 %1054
        %v1056 = vsel %vm1049, %v1019, 0.0
        %1057 = vadd.xlane.f32.xlu0 %v1056
        %v1058 = vpop.xlane.xlu0 %1057
        %v1059 = vsel %vm1049, %v1020, 0.0
        %1060 = vadd.xlane.f32.xlu0 %v1059
        %v1061 = vpop.xlane.xlu0 %1060
        %v1062 = vsel %vm1049, %v1021, 0.0
        %1063 = vadd.xlane.f32.xlu0 %v1062
        %v1064 = vpop.xlane.xlu0 %1063
        %v1065 = vsel %vm1049, %v1022, 0.0
        %1066 = vadd.xlane.f32.xlu0 %v1065
        %v1067 = vpop.xlane.xlu0 %1066
        %v1068 = vsel %vm1049, %v1023, 0.0
        %1069 = vadd.xlane.f32.xlu0 %v1068
        %v1070 = vpop.xlane.xlu0 %1069
        %v1071 = vsel %vm1049, %v1024, 0.0
        %1072 = vadd.xlane.f32.xlu0 %v1071
        %v1073 = vpop.xlane.xlu0 %1072
        %v1074 = vsel %vm1049, %v1025, 0.0
        %1075 = vadd.xlane.f32.xlu0 %v1074
        %v1076 = vpop.xlane.xlu0 %1075
        %v1077 = vsel %vm1049, %v1026, 0.0
        %1078 = vadd.xlane.f32.xlu0 %v1077
        %v1079 = vpop.xlane.xlu0 %1078
        %v1080 = vsel %vm1049, %v1027, 0.0
        %1081 = vadd.xlane.f32.xlu0 %v1080
        %v1082 = vpop.xlane.xlu0 %1081
        %v1083 = vsel %vm1049, %v1028, 0.0
        %1084 = vadd.xlane.f32.xlu0 %v1083
        %v1085 = vpop.xlane.xlu0 %1084
        %v1086 = vsel %vm1049, %v1029, 0.0
        %1087 = vadd.xlane.f32.xlu0 %v1086
        %v1088 = vpop.xlane.xlu0 %1087
        %v1089 = vsel %vm1049, %v1030, 0.0
        %1090 = vadd.xlane.f32.xlu0 %v1089
        %v1091 = vpop.xlane.xlu0 %1090
        %v1092 = vsel %vm1049, %v1031, 0.0
        %1093 = vadd.xlane.f32.xlu0 %v1092
        %v1094 = vpop.xlane.xlu0 %1093
        %v1095 = vsel %vm1049, %v1032, 0.0
        %1096 = vadd.xlane.f32.xlu0 %v1095
        %v1097 = vpop.xlane.xlu0 %1096
        %v1098 = vsel %vm1049, %v1033, 0.0
        %1099 = vadd.xlane.f32.xlu0 %v1098
        %v1100 = vpop.xlane.xlu0 %1099
        %v1101 = vsel %vm1049, %v1034, 0.0
        %1102 = vadd.xlane.f32.xlu0 %v1101
        %v1103 = vpop.xlane.xlu0 %1102
        %v1104 = vsel %vm1049, %v1035, 0.0
        %1105 = vadd.xlane.f32.xlu0 %v1104
        %v1106 = vpop.xlane.xlu0 %1105
        %v1107 = vsel %vm1049, %v1036, 0.0
        %1108 = vadd.xlane.f32.xlu0 %v1107
        %v1109 = vpop.xlane.xlu0 %1108
        %v1110 = vsel %vm1049, %v1037, 0.0
        %1111 = vadd.xlane.f32.xlu0 %v1110
        %v1112 = vpop.xlane.xlu0 %1111
        %v1113 = vsel %vm1049, %v1038, 0.0
        %1114 = vadd.xlane.f32.xlu0 %v1113
        %v1115 = vpop.xlane.xlu0 %1114
        %v1116 = vsel %vm1049, %v1039, 0.0
        %1117 = vadd.xlane.f32.xlu0 %v1116
        %v1118 = vpop.xlane.xlu0 %1117
        %v1119 = vsel %vm1049, %v1040, 0.0
        %1120 = vadd.xlane.f32.xlu0 %v1119
        %v1121 = vpop.xlane.xlu0 %1120
        %v1122 = vsel %vm1049, %v1041, 0.0
        %1123 = vadd.xlane.f32.xlu0 %v1122
        %v1124 = vpop.xlane.xlu0 %1123
        %v1125 = vsel %vm1049, %v1042, 0.0
        %1126 = vadd.xlane.f32.xlu0 %v1125
        %v1127 = vpop.xlane.xlu0 %1126
        %v1128 = vsel %vm1049, %v1043, 0.0
        %1129 = vadd.xlane.f32.xlu0 %v1128
        %v1130 = vpop.xlane.xlu0 %1129
        %v1131 = vsel %vm1049, %v1044, 0.0
        %1132 = vadd.xlane.f32.xlu0 %v1131
        %v1133 = vpop.xlane.xlu0 %1132
        %v1134 = vsel %vm1049, %v1045, 0.0
        %1135 = vadd.xlane.f32.xlu0 %v1134
        %v1136 = vpop.xlane.xlu0 %1135
        %v1137 = vsel %vm1049, %v1046, 0.0
        %1138 = vadd.xlane.f32.xlu0 %v1137
        %v1139 = vpop.xlane.xlu0 %1138
        %v1140 = vsel %vm1049, %v1047, 0.0
        %1141 = vadd.xlane.f32.xlu0 %v1140
        %v1142 = vpop.xlane.xlu0 %1141
        %v1143 = vsel %vm1049, %v1048, 0.0
        %1144 = vadd.xlane.f32.xlu0 %v1143
        %v1145 = vpop.xlane.xlu0 %1144
        %v1146 = vrsqrt.pop %v1052
        %v1147 = vmul.f32 %v1052, %v1146
        %vm1148 = vcmp.eq.f32.partialorder %v1052, inf
        %v1149 = vsel %vm1148, %v1052, %v1147
        %vm1150 = vcmp.eq.f32.partialorder %v1052, 0.0
        %v1151 = vand.u32 %v1052, 2147483648
        %v1152 = vsel %vm1150, %v1151, %v1149
        %v1153 = vrsqrt.pop %v1055
        %v1154 = vmul.f32 %v1055, %v1153
        %vm1155 = vcmp.eq.f32.partialorder %v1055, inf
        %v1156 = vsel %vm1155, %v1055, %v1154
        %vm1157 = vcmp.eq.f32.partialorder %v1055, 0.0
        %v1158 = vand.u32 %v1055, 2147483648
        %v1159 = vsel %vm1157, %v1158, %v1156
        %v1160 = vrsqrt.pop %v1058
        %v1161 = vmul.f32 %v1058, %v1160
        %vm1162 = vcmp.eq.f32.partialorder %v1058, inf
        %v1163 = vsel %vm1162, %v1058, %v1161
        %vm1164 = vcmp.eq.f32.partialorder %v1058, 0.0
        %v1165 = vand.u32 %v1058, 2147483648
        %v1166 = vsel %vm1164, %v1165, %v1163
        %v1167 = vrsqrt.pop %v1061
        %v1168 = vmul.f32 %v1061, %v1167
        %vm1169 = vcmp.eq.f32.partialorder %v1061, inf
        %v1170 = vsel %vm1169, %v1061, %v1168
        %vm1171 = vcmp.eq.f32.partialorder %v1061, 0.0
        %v1172 = vand.u32 %v1061, 2147483648
        %v1173 = vsel %vm1171, %v1172, %v1170
        %v1174 = vrsqrt.pop %v1064
        %v1175 = vmul.f32 %v1064, %v1174
        %vm1176 = vcmp.eq.f32.partialorder %v1064, inf
        %v1177 = vsel %vm1176, %v1064, %v1175
        %vm1178 = vcmp.eq.f32.partialorder %v1064, 0.0
        %v1179 = vand.u32 %v1064, 2147483648
        %v1180 = vsel %vm1178, %v1179, %v1177
        %v1181 = vrsqrt.pop %v1067
        %v1182 = vmul.f32 %v1067, %v1181
        %vm1183 = vcmp.eq.f32.partialorder %v1067, inf
        %v1184 = vsel %vm1183, %v1067, %v1182
        %vm1185 = vcmp.eq.f32.partialorder %v1067, 0.0
        %v1186 = vand.u32 %v1067, 2147483648
        %v1187 = vsel %vm1185, %v1186, %v1184
        %v1188 = vrsqrt.pop %v1070
        %v1189 = vmul.f32 %v1070, %v1188
        %vm1190 = vcmp.eq.f32.partialorder %v1070, inf
        %v1191 = vsel %vm1190, %v1070, %v1189
        %vm1192 = vcmp.eq.f32.partialorder %v1070, 0.0
        %v1193 = vand.u32 %v1070, 2147483648
        %v1194 = vsel %vm1192, %v1193, %v1191
        %v1195 = vrsqrt.pop %v1073
        %v1196 = vmul.f32 %v1073, %v1195
        %vm1197 = vcmp.eq.f32.partialorder %v1073, inf
        %v1198 = vsel %vm1197, %v1073, %v1196
        %vm1199 = vcmp.eq.f32.partialorder %v1073, 0.0
        %v1200 = vand.u32 %v1073, 2147483648
        %v1201 = vsel %vm1199, %v1200, %v1198
        %v1202 = vrsqrt.pop %v1076
        %v1203 = vmul.f32 %v1076, %v1202
        %vm1204 = vcmp.eq.f32.partialorder %v1076, inf
        %v1205 = vsel %vm1204, %v1076, %v1203
        %vm1206 = vcmp.eq.f32.partialorder %v1076, 0.0
        %v1207 = vand.u32 %v1076, 2147483648
        %v1208 = vsel %vm1206, %v1207, %v1205
        %v1209 = vrsqrt.pop %v1079
        %v1210 = vmul.f32 %v1079, %v1209
        %vm1211 = vcmp.eq.f32.partialorder %v1079, inf
        %v1212 = vsel %vm1211, %v1079, %v1210
        %vm1213 = vcmp.eq.f32.partialorder %v1079, 0.0
        %v1214 = vand.u32 %v1079, 2147483648
        %v1215 = vsel %vm1213, %v1214, %v1212
        %v1216 = vrsqrt.pop %v1082
        %v1217 = vmul.f32 %v1082, %v1216
        %vm1218 = vcmp.eq.f32.partialorder %v1082, inf
        %v1219 = vsel %vm1218, %v1082, %v1217
        %vm1220 = vcmp.eq.f32.partialorder %v1082, 0.0
        %v1221 = vand.u32 %v1082, 2147483648
        %v1222 = vsel %vm1220, %v1221, %v1219
        %v1223 = vrsqrt.pop %v1085
        %v1224 = vmul.f32 %v1085, %v1223
        %vm1225 = vcmp.eq.f32.partialorder %v1085, inf
        %v1226 = vsel %vm1225, %v1085, %v1224
        %vm1227 = vcmp.eq.f32.partialorder %v1085, 0.0
        %v1228 = vand.u32 %v1085, 2147483648
        %v1229 = vsel %vm1227, %v1228, %v1226
        %v1230 = vrsqrt.pop %v1088
        %v1231 = vmul.f32 %v1088, %v1230
        %vm1232 = vcmp.eq.f32.partialorder %v1088, inf
        %v1233 = vsel %vm1232, %v1088, %v1231
        %vm1234 = vcmp.eq.f32.partialorder %v1088, 0.0
        %v1235 = vand.u32 %v1088, 2147483648
        %v1236 = vsel %vm1234, %v1235, %v1233
        %v1237 = vrsqrt.pop %v1091
        %v1238 = vmul.f32 %v1091, %v1237
        %vm1239 = vcmp.eq.f32.partialorder %v1091, inf
        %v1240 = vsel %vm1239, %v1091, %v1238
        %vm1241 = vcmp.eq.f32.partialorder %v1091, 0.0
        %v1242 = vand.u32 %v1091, 2147483648
        %v1243 = vsel %vm1241, %v1242, %v1240
        %v1244 = vrsqrt.pop %v1094
        %v1245 = vmul.f32 %v1094, %v1244
        %vm1246 = vcmp.eq.f32.partialorder %v1094, inf
        %v1247 = vsel %vm1246, %v1094, %v1245
        %vm1248 = vcmp.eq.f32.partialorder %v1094, 0.0
        %v1249 = vand.u32 %v1094, 2147483648
        %v1250 = vsel %vm1248, %v1249, %v1247
        %v1251 = vrsqrt.pop %v1097
        %v1252 = vmul.f32 %v1097, %v1251
        %vm1253 = vcmp.eq.f32.partialorder %v1097, inf
        %v1254 = vsel %vm1253, %v1097, %v1252
        %vm1255 = vcmp.eq.f32.partialorder %v1097, 0.0
        %v1256 = vand.u32 %v1097, 2147483648
        %v1257 = vsel %vm1255, %v1256, %v1254
        %v1258 = vrsqrt.pop %v1100
        %v1259 = vmul.f32 %v1100, %v1258
        %vm1260 = vcmp.eq.f32.partialorder %v1100, inf
        %v1261 = vsel %vm1260, %v1100, %v1259
        %vm1262 = vcmp.eq.f32.partialorder %v1100, 0.0
        %v1263 = vand.u32 %v1100, 2147483648
        %v1264 = vsel %vm1262, %v1263, %v1261
        %v1265 = vrsqrt.pop %v1103
        %v1266 = vmul.f32 %v1103, %v1265
        %vm1267 = vcmp.eq.f32.partialorder %v1103, inf
        %v1268 = vsel %vm1267, %v1103, %v1266
        %vm1269 = vcmp.eq.f32.partialorder %v1103, 0.0
        %v1270 = vand.u32 %v1103, 2147483648
        %v1271 = vsel %vm1269, %v1270, %v1268
        %v1272 = vrsqrt.pop %v1106
        %v1273 = vmul.f32 %v1106, %v1272
        %vm1274 = vcmp.eq.f32.partialorder %v1106, inf
        %v1275 = vsel %vm1274, %v1106, %v1273
        %vm1276 = vcmp.eq.f32.partialorder %v1106, 0.0
        %v1277 = vand.u32 %v1106, 2147483648
        %v1278 = vsel %vm1276, %v1277, %v1275
        %v1279 = vrsqrt.pop %v1109
        %v1280 = vmul.f32 %v1109, %v1279
        %vm1281 = vcmp.eq.f32.partialorder %v1109, inf
        %v1282 = vsel %vm1281, %v1109, %v1280
        %vm1283 = vcmp.eq.f32.partialorder %v1109, 0.0
        %v1284 = vand.u32 %v1109, 2147483648
        %v1285 = vsel %vm1283, %v1284, %v1282
        %v1286 = vrsqrt.pop %v1112
        %v1287 = vmul.f32 %v1112, %v1286
        %vm1288 = vcmp.eq.f32.partialorder %v1112, inf
        %v1289 = vsel %vm1288, %v1112, %v1287
        %vm1290 = vcmp.eq.f32.partialorder %v1112, 0.0
        %v1291 = vand.u32 %v1112, 2147483648
        %v1292 = vsel %vm1290, %v1291, %v1289
        %v1293 = vrsqrt.pop %v1115
        %v1294 = vmul.f32 %v1115, %v1293
        %vm1295 = vcmp.eq.f32.partialorder %v1115, inf
        %v1296 = vsel %vm1295, %v1115, %v1294
        %vm1297 = vcmp.eq.f32.partialorder %v1115, 0.0
        %v1298 = vand.u32 %v1115, 2147483648
        %v1299 = vsel %vm1297, %v1298, %v1296
        %v1300 = vrsqrt.pop %v1118
        %v1301 = vmul.f32 %v1118, %v1300
        %vm1302 = vcmp.eq.f32.partialorder %v1118, inf
        %v1303 = vsel %vm1302, %v1118, %v1301
        %vm1304 = vcmp.eq.f32.partialorder %v1118, 0.0
        %v1305 = vand.u32 %v1118, 2147483648
        %v1306 = vsel %vm1304, %v1305, %v1303
        %v1307 = vrsqrt.pop %v1121
        %v1308 = vmul.f32 %v1121, %v1307
        %vm1309 = vcmp.eq.f32.partialorder %v1121, inf
        %v1310 = vsel %vm1309, %v1121, %v1308
        %vm1311 = vcmp.eq.f32.partialorder %v1121, 0.0
        %v1312 = vand.u32 %v1121, 2147483648
        %v1313 = vsel %vm1311, %v1312, %v1310
        %v1314 = vrsqrt.pop %v1124
        %v1315 = vmul.f32 %v1124, %v1314
        %vm1316 = vcmp.eq.f32.partialorder %v1124, inf
        %v1317 = vsel %vm1316, %v1124, %v1315
        %vm1318 = vcmp.eq.f32.partialorder %v1124, 0.0
        %v1319 = vand.u32 %v1124, 2147483648
        %v1320 = vsel %vm1318, %v1319, %v1317
        %v1321 = vrsqrt.pop %v1127
        %v1322 = vmul.f32 %v1127, %v1321
        %vm1323 = vcmp.eq.f32.partialorder %v1127, inf
        %v1324 = vsel %vm1323, %v1127, %v1322
        %vm1325 = vcmp.eq.f32.partialorder %v1127, 0.0
        %v1326 = vand.u32 %v1127, 2147483648
        %v1327 = vsel %vm1325, %v1326, %v1324
        %v1328 = vrsqrt.pop %v1130
        %v1329 = vmul.f32 %v1130, %v1328
        %vm1330 = vcmp.eq.f32.partialorder %v1130, inf
        %v1331 = vsel %vm1330, %v1130, %v1329
        %vm1332 = vcmp.eq.f32.partialorder %v1130, 0.0
        %v1333 = vand.u32 %v1130, 2147483648
        %v1334 = vsel %vm1332, %v1333, %v1331
        %v1335 = vrsqrt.pop %v1133
        %v1336 = vmul.f32 %v1133, %v1335
        %vm1337 = vcmp.eq.f32.partialorder %v1133, inf
        %v1338 = vsel %vm1337, %v1133, %v1336
        %vm1339 = vcmp.eq.f32.partialorder %v1133, 0.0
        %v1340 = vand.u32 %v1133, 2147483648
        %v1341 = vsel %vm1339, %v1340, %v1338
        %v1342 = vrsqrt.pop %v1136
        %v1343 = vmul.f32 %v1136, %v1342
        %vm1344 = vcmp.eq.f32.partialorder %v1136, inf
        %v1345 = vsel %vm1344, %v1136, %v1343
        %vm1346 = vcmp.eq.f32.partialorder %v1136, 0.0
        %v1347 = vand.u32 %v1136, 2147483648
        %v1348 = vsel %vm1346, %v1347, %v1345
        %v1349 = vrsqrt.pop %v1139
        %v1350 = vmul.f32 %v1139, %v1349
        %vm1351 = vcmp.eq.f32.partialorder %v1139, inf
        %v1352 = vsel %vm1351, %v1139, %v1350
        %vm1353 = vcmp.eq.f32.partialorder %v1139, 0.0
        %v1354 = vand.u32 %v1139, 2147483648
        %v1355 = vsel %vm1353, %v1354, %v1352
        %v1356 = vrsqrt.pop %v1142
        %v1357 = vmul.f32 %v1142, %v1356
        %vm1358 = vcmp.eq.f32.partialorder %v1142, inf
        %v1359 = vsel %vm1358, %v1142, %v1357
        %vm1360 = vcmp.eq.f32.partialorder %v1142, 0.0
        %v1361 = vand.u32 %v1142, 2147483648
        %v1362 = vsel %vm1360, %v1361, %v1359
        %v1363 = vrsqrt.pop %v1145
        %v1364 = vmul.f32 %v1145, %v1363
        %vm1365 = vcmp.eq.f32.partialorder %v1145, inf
        %v1366 = vsel %vm1365, %v1145, %v1364
        %vm1367 = vcmp.eq.f32.partialorder %v1145, 0.0
        %v1368 = vand.u32 %v1145, 2147483648
        %v1369 = vsel %vm1367, %v1368, %v1366
        %v1370 = vmax.f32 %v1152, 1e-12
        %v1371 = vmax.f32 %v1159, 1e-12
        %v1372 = vmax.f32 %v1166, 1e-12
        %v1373 = vmax.f32 %v1173, 1e-12
        %v1374 = vmax.f32 %v1180, 1e-12
        %v1375 = vmax.f32 %v1187, 1e-12
        %v1376 = vmax.f32 %v1194, 1e-12
        %v1377 = vmax.f32 %v1201, 1e-12
        %v1378 = vmax.f32 %v1208, 1e-12
        %v1379 = vmax.f32 %v1215, 1e-12
        %v1380 = vmax.f32 %v1222, 1e-12
        %v1381 = vmax.f32 %v1229, 1e-12
        %v1382 = vmax.f32 %v1236, 1e-12
        %v1383 = vmax.f32 %v1243, 1e-12
        %v1384 = vmax.f32 %v1250, 1e-12
        %v1385 = vmax.f32 %v1257, 1e-12
        %v1386 = vmax.f32 %v1264, 1e-12
        %v1387 = vmax.f32 %v1271, 1e-12
        %v1388 = vmax.f32 %v1278, 1e-12
        %v1389 = vmax.f32 %v1285, 1e-12
        %v1390 = vmax.f32 %v1292, 1e-12
        %v1391 = vmax.f32 %v1299, 1e-12
        %v1392 = vmax.f32 %v1306, 1e-12
        %v1393 = vmax.f32 %v1313, 1e-12
        %v1394 = vmax.f32 %v1320, 1e-12
        %v1395 = vmax.f32 %v1327, 1e-12
        %v1396 = vmax.f32 %v1334, 1e-12
        %v1397 = vmax.f32 %v1341, 1e-12
        %v1398 = vmax.f32 %v1348, 1e-12
        %v1399 = vmax.f32 %v1355, 1e-12
        %v1400 = vmax.f32 %v1362, 1e-12
        %v1401 = vmax.f32 %v1369, 1e-12
        %v1402 = vrcp.pop %v1370
        %v1403 = vrcp.pop %v1371
        %v1404 = vrcp.pop %v1372
        %v1405 = vrcp.pop %v1373
        %v1406 = vrcp.pop %v1374
        %v1407 = vrcp.pop %v1375
        %v1408 = vrcp.pop %v1376
        %v1409 = vrcp.pop %v1377
        %v1410 = vrcp.pop %v1378
        %v1411 = vrcp.pop %v1379
        %v1412 = vrcp.pop %v1380
        %v1413 = vrcp.pop %v1381
        %v1414 = vrcp.pop %v1382
        %v1415 = vrcp.pop %v1383
        %v1416 = vrcp.pop %v1384
        %v1417 = vrcp.pop %v1385
        %v1418 = vrcp.pop %v1386
        %v1419 = vrcp.pop %v1387
        %v1420 = vrcp.pop %v1388
        %v1421 = vrcp.pop %v1389
        %v1422 = vrcp.pop %v1390
        %v1423 = vrcp.pop %v1391
        %v1424 = vrcp.pop %v1392
        %v1425 = vrcp.pop %v1393
        %v1426 = vrcp.pop %v1394
        %v1427 = vrcp.pop %v1395
        %v1428 = vrcp.pop %v1396
        %v1429 = vrcp.pop %v1397
        %v1430 = vrcp.pop %v1398
        %v1431 = vrcp.pop %v1399
        %v1432 = vrcp.pop %v1400
        %v1433 = vrcp.pop %v1401
        %v1434 = vmul.f32 %v861, %v861
        %v1435 = vmul.f32 %v866, %v866
        %v1436 = vmul.f32 %v871, %v871
        %v1437 = vmul.f32 %v876, %v876
        %v1438 = vmul.f32 %v881, %v881
        %v1439 = vmul.f32 %v886, %v886
        %v1440 = vmul.f32 %v891, %v891
        %v1441 = vmul.f32 %v896, %v896
        %v1442 = vsel %vm1049, %v1434, 0.0
        %1443 = vadd.xlane.f32.xlu0 %v1442
        %v1444 = vpop.xlane.xlu0 %1443
        %v1445 = vsel %vm1049, %v1435, 0.0
        %1446 = vadd.xlane.f32.xlu0 %v1445
        %v1447 = vpop.xlane.xlu0 %1446
        %v1448 = vsel %vm1049, %v1436, 0.0
        %1449 = vadd.xlane.f32.xlu0 %v1448
        %v1450 = vpop.xlane.xlu0 %1449
        %v1451 = vsel %vm1049, %v1437, 0.0
        %1452 = vadd.xlane.f32.xlu0 %v1451
        %v1453 = vpop.xlane.xlu0 %1452
        %v1454 = vsel %vm1049, %v1438, 0.0
        %1455 = vadd.xlane.f32.xlu0 %v1454
        %v1456 = vpop.xlane.xlu0 %1455
        %v1457 = vsel %vm1049, %v1439, 0.0
        %1458 = vadd.xlane.f32.xlu0 %v1457
        %v1459 = vpop.xlane.xlu0 %1458
        %v1460 = vsel %vm1049, %v1440, 0.0
        %1461 = vadd.xlane.f32.xlu0 %v1460
        %v1462 = vpop.xlane.xlu0 %1461
        %v1463 = vsel %vm1049, %v1441, 0.0
        %1464 = vadd.xlane.f32.xlu0 %v1463
        %v1465 = vpop.xlane.xlu0 %1464
        %v1466 = vrsqrt.pop %v1444
        %v1467 = vmul.f32 %v1444, %v1466
        %vm1468 = vcmp.eq.f32.partialorder %v1444, inf
        %v1469 = vsel %vm1468, %v1444, %v1467
        %vm1470 = vcmp.eq.f32.partialorder %v1444, 0.0
        %v1471 = vand.u32 %v1444, 2147483648
        %v1472 = vsel %vm1470, %v1471, %v1469
        %v1473 = vrsqrt.pop %v1447
        %v1474 = vmul.f32 %v1447, %v1473
        %vm1475 = vcmp.eq.f32.partialorder %v1447, inf
        %v1476 = vsel %vm1475, %v1447, %v1474
        %vm1477 = vcmp.eq.f32.partialorder %v1447, 0.0
        %v1478 = vand.u32 %v1447, 2147483648
        %v1479 = vsel %vm1477, %v1478, %v1476
        %v1480 = vrsqrt.pop %v1450
        %v1481 = vmul.f32 %v1450, %v1480
        %vm1482 = vcmp.eq.f32.partialorder %v1450, inf
        %v1483 = vsel %vm1482, %v1450, %v1481
        %vm1484 = vcmp.eq.f32.partialorder %v1450, 0.0
        %v1485 = vand.u32 %v1450, 2147483648
        %v1486 = vsel %vm1484, %v1485, %v1483
        %v1487 = vrsqrt.pop %v1453
        %v1488 = vmul.f32 %v1453, %v1487
        %vm1489 = vcmp.eq.f32.partialorder %v1453, inf
        %v1490 = vsel %vm1489, %v1453, %v1488
        %vm1491 = vcmp.eq.f32.partialorder %v1453, 0.0
        %v1492 = vand.u32 %v1453, 2147483648
        %v1493 = vsel %vm1491, %v1492, %v1490
        %v1494 = vrsqrt.pop %v1456
        %v1495 = vmul.f32 %v1456, %v1494
        %vm1496 = vcmp.eq.f32.partialorder %v1456, inf
        %v1497 = vsel %vm1496, %v1456, %v1495
        %vm1498 = vcmp.eq.f32.partialorder %v1456, 0.0
        %v1499 = vand.u32 %v1456, 2147483648
        %v1500 = vsel %vm1498, %v1499, %v1497
        %v1501 = vrsqrt.pop %v1459
        %v1502 = vmul.f32 %v1459, %v1501
        %vm1503 = vcmp.eq.f32.partialorder %v1459, inf
        %v1504 = vsel %vm1503, %v1459, %v1502
        %vm1505 = vcmp.eq.f32.partialorder %v1459, 0.0
        %v1506 = vand.u32 %v1459, 2147483648
        %v1507 = vsel %vm1505, %v1506, %v1504
        %v1508 = vrsqrt.pop %v1462
        %v1509 = vmul.f32 %v1462, %v1508
        %vm1510 = vcmp.eq.f32.partialorder %v1462, inf
        %v1511 = vsel %vm1510, %v1462, %v1509
        %vm1512 = vcmp.eq.f32.partialorder %v1462, 0.0
        %v1513 = vand.u32 %v1462, 2147483648
        %v1514 = vsel %vm1512, %v1513, %v1511
        %v1515 = vrsqrt.pop %v1465
        %v1516 = vmul.f32 %v1465, %v1515
        %vm1517 = vcmp.eq.f32.partialorder %v1465, inf
        %v1518 = vsel %vm1517, %v1465, %v1516
        %vm1519 = vcmp.eq.f32.partialorder %v1465, 0.0
        %v1520 = vand.u32 %v1465, 2147483648
        %v1521 = vsel %vm1519, %v1520, %v1518
        %v1522 = vmax.f32 %v1472, 1e-12
        %v1523 = vmax.f32 %v1479, 1e-12
        %v1524 = vmax.f32 %v1486, 1e-12
        %v1525 = vmax.f32 %v1493, 1e-12
        %v1526 = vmax.f32 %v1500, 1e-12
        %v1527 = vmax.f32 %v1507, 1e-12
        %v1528 = vmax.f32 %v1514, 1e-12
        %v1529 = vmax.f32 %v1521, 1e-12
        %v1530 = vrcp.pop %v1522
        %v1531 = vrcp.pop %v1523
        %v1532 = vrcp.pop %v1524
        %v1533 = vrcp.pop %v1525
        %v1534 = vrcp.pop %v1526
        %v1535 = vrcp.pop %v1527
        %v1536 = vrcp.pop %v1528
        %v1537 = vrcp.pop %v1529
        %v1538 = vmul.f32 %v599, %v1402
        %v1539 = vmul.f32 %v604, %v1403
        %v1540 = vmul.f32 %v609, %v1404
        %v1541 = vmul.f32 %v614, %v1405
        %v1542 = vmul.f32 %v619, %v1406
        %v1543 = vmul.f32 %v624, %v1407
        %v1544 = vmul.f32 %v629, %v1408
        %v1545 = vmul.f32 %v634, %v1409
        %v1546 = vmul.f32 %v639, %v1410
        %v1547 = vmul.f32 %v644, %v1411
        %v1548 = vmul.f32 %v649, %v1412
        %v1549 = vmul.f32 %v654, %v1413
        %v1550 = vmul.f32 %v659, %v1414
        %v1551 = vmul.f32 %v664, %v1415
        %v1552 = vmul.f32 %v669, %v1416
        %v1553 = vmul.f32 %v674, %v1417
        %v1554 = vmul.f32 %v679, %v1418
        %v1555 = vmul.f32 %v684, %v1419
        %v1556 = vmul.f32 %v689, %v1420
        %v1557 = vmul.f32 %v694, %v1421
        %v1558 = vmul.f32 %v699, %v1422
        %v1559 = vmul.f32 %v704, %v1423
        %v1560 = vmul.f32 %v709, %v1424
        %v1561 = vmul.f32 %v714, %v1425
        %v1562 = vmul.f32 %v719, %v1426
        %v1563 = vmul.f32 %v724, %v1427
        %v1564 = vmul.f32 %v729, %v1428
        %v1565 = vmul.f32 %v734, %v1429
        %v1566 = vmul.f32 %v739, %v1430
        %v1567 = vmul.f32 %v744, %v1431
        %v1568 = vmul.f32 %v749, %v1432
        %v1569 = vmul.f32 %v754, %v1433
        %v1570 = vmul.f32 %v861, %v1530
        %v1571 = vmul.f32 %v866, %v1531
        %v1572 = vmul.f32 %v871, %v1532
        %v1573 = vmul.f32 %v876, %v1533
        %v1574 = vmul.f32 %v881, %v1534
        %v1575 = vmul.f32 %v886, %v1535
        %v1576 = vmul.f32 %v891, %v1536
        %v1577 = vmul.f32 %v896, %v1537
        %v1578 = vld [vmem:[%s8] sm:$0xff]
        %v1579 = vld [vmem:[%s8 + $0x8] sm:$0xff]
        %v1580 = vld [vmem:[%s8 + $0x10] sm:$0xff]
        %v1581 = vld [vmem:[%s8 + $0x18] sm:$0xff]
        %v1582 = vld [vmem:[%s8 + $0x20] sm:$0xff]
        %v1583 = vld [vmem:[%s8 + $0x28] sm:$0xff]
        %v1584 = vld [vmem:[%s8 + $0x30] sm:$0xff]
        %v1585 = vld [vmem:[%s8 + $0x38] sm:$0xff]
        %1587 = vset.pattern.permute.xlu0 0
        %1588 = vperm.xlu0 %1587, %v1578
        %v1589 = vpop.permute.xlu0 %1588
        %1592 = vset.pattern.permute.xlu0 0
        %1593 = vperm.xlu0 %1592, %v1579
        %v1594 = vpop.permute.xlu0 %1593
        %1597 = vset.pattern.permute.xlu0 0
        %1598 = vperm.xlu0 %1597, %v1580
        %v1599 = vpop.permute.xlu0 %1598
        %1602 = vset.pattern.permute.xlu0 0
        %1603 = vperm.xlu0 %1602, %v1581
        %v1604 = vpop.permute.xlu0 %1603
        %1607 = vset.pattern.permute.xlu0 0
        %1608 = vperm.xlu0 %1607, %v1582
        %v1609 = vpop.permute.xlu0 %1608
        %1612 = vset.pattern.permute.xlu0 0
        %1613 = vperm.xlu0 %1612, %v1583
        %v1614 = vpop.permute.xlu0 %1613
        %1617 = vset.pattern.permute.xlu0 0
        %1618 = vperm.xlu0 %1617, %v1584
        %v1619 = vpop.permute.xlu0 %1618
        %1622 = vset.pattern.permute.xlu0 0
        %1623 = vperm.xlu0 %1622, %v1585
        %v1624 = vpop.permute.xlu0 %1623
        %v1626 = vmul.f32 %v1570, %v1589
        %v1627 = vmul.f32 %v1571, %v1594
        %v1628 = vmul.f32 %v1572, %v1599
        %v1629 = vmul.f32 %v1573, %v1604
        %v1630 = vmul.f32 %v1574, %v1609
        %v1631 = vmul.f32 %v1575, %v1614
        %v1632 = vmul.f32 %v1576, %v1619
        %v1633 = vmul.f32 %v1577, %v1624
        %v1635 = vsel %vm1049, %v1538, 0
        %v1638 = vsel %vm1049, %v1539, 0
        %v1641 = vsel %vm1049, %v1540, 0
        %v1644 = vsel %vm1049, %v1541, 0
        %v1647 = vsel %vm1049, %v1542, 0
        %v1650 = vsel %vm1049, %v1543, 0
        %v1653 = vsel %vm1049, %v1544, 0
        %v1656 = vsel %vm1049, %v1545, 0
        %v1659 = vsel %vm1049, %v1546, 0
        %v1662 = vsel %vm1049, %v1547, 0
        %v1665 = vsel %vm1049, %v1548, 0
        %v1668 = vsel %vm1049, %v1549, 0
        %v1671 = vsel %vm1049, %v1550, 0
        %v1674 = vsel %vm1049, %v1551, 0
        %v1677 = vsel %vm1049, %v1552, 0
        %v1680 = vsel %vm1049, %v1553, 0
        %v1683 = vsel %vm1049, %v1554, 0
        %v1686 = vsel %vm1049, %v1555, 0
        %v1689 = vsel %vm1049, %v1556, 0
        %v1692 = vsel %vm1049, %v1557, 0
        %v1695 = vsel %vm1049, %v1558, 0
        %v1698 = vsel %vm1049, %v1559, 0
        %v1701 = vsel %vm1049, %v1560, 0
        %v1704 = vsel %vm1049, %v1561, 0
        %v1707 = vsel %vm1049, %v1562, 0
        %v1710 = vsel %vm1049, %v1563, 0
        %v1713 = vsel %vm1049, %v1564, 0
        %v1716 = vsel %vm1049, %v1565, 0
        %v1719 = vsel %vm1049, %v1566, 0
        %v1722 = vsel %vm1049, %v1567, 0
        %v1725 = vsel %vm1049, %v1568, 0
        %v1728 = vsel %vm1049, %v1569, 0
        %v1731 = vsel %vm1049, %v1626, 0
        %v1734 = vsel %vm1049, %v1627, 0
        %v1737 = vsel %vm1049, %v1628, 0
        %v1740 = vsel %vm1049, %v1629, 0
        %v1743 = vsel %vm1049, %v1630, 0
        %v1746 = vsel %vm1049, %v1631, 0
        %v1749 = vsel %vm1049, %v1632, 0
        %v1752 = vsel %vm1049, %v1633, 0
        %1754 = vmatprep.subr.mxu0 0.0
        %1755 = vmatpush1.xpose.msra.mxu0 0.0
        %1756 = vmatprep.subr.mxu0 0.0
        %1757 = vmatpush1.xpose.msra.mxu0 0.0
        %1758 = vmatprep.subr.mxu0 0.0
        %1759 = vmatpush1.xpose.msra.mxu0 0.0
        %1760 = vmatprep.subr.mxu0 0.0
        %1761 = vmatpush1.xpose.msra.mxu0 0.0
        %1762 = vmatprep.subr.mxu0 0.0
        %1763 = vmatpush1.xpose.msra.mxu0 0.0
        %1764 = vmatprep.subr.mxu0 0.0
        %1765 = vmatpush1.xpose.msra.mxu0 0.0
        %1766 = vmatprep.subr.mxu0 0.0
        %1767 = vmatpush1.xpose.msra.mxu0 0.0
        %1768 = vmatprep.subr.mxu0 0.0
        %1769 = vmatpush1.xpose.msra.mxu0 0.0
        %1770 = vmatprep.subr.mxu0 0.0
        %1771 = vmatpush1.xpose.msra.mxu0 %v1752
        %1772 = vmatprep.subr.mxu0 0.0
        %1773 = vmatpush1.xpose.msra.mxu0 %v1749
        %1774 = vmatprep.subr.mxu0 0.0
        %1775 = vmatpush1.xpose.msra.mxu0 %v1746
        %1776 = vmatprep.subr.mxu0 0.0
        %1777 = vmatpush1.xpose.msra.mxu0 %v1743
        %1778 = vmatprep.subr.mxu0 0.0
        %1779 = vmatpush1.xpose.msra.mxu0 %v1740
        %1780 = vmatprep.subr.mxu0 0.0
        %1781 = vmatpush1.xpose.msra.mxu0 %v1737
        %1782 = vmatprep.subr.mxu0 0.0
        %1783 = vmatpush1.xpose.msra.mxu0 %v1734
        %1784 = vmatprep.subr.mxu0 0.0
        %1785 = vmatpush1.xpose.msra.mxu0 %v1731
        %1786 = vmatprep.subr.mxu0 0.0
        %1787 = vmatpush2.xpose.msra.mxu0 0.0
        %1788 = vmatprep.subr.mxu0 0.0
        %1789 = vmatpush2.xpose.msra.mxu0 0.0
        %1790 = vmatprep.subr.mxu0 0.0
        %1791 = vmatpush2.xpose.msra.mxu0 0.0
        %1792 = vmatprep.subr.mxu0 0.0
        %1793 = vmatpush2.xpose.msra.mxu0 0.0
        %1794 = vmatprep.subr.mxu0 0.0
        %1795 = vmatpush2.xpose.msra.mxu0 0.0
        %1796 = vmatprep.subr.mxu0 0.0
        %1797 = vmatpush2.xpose.msra.mxu0 0.0
        %1798 = vmatprep.subr.mxu0 0.0
        %1799 = vmatpush2.xpose.msra.mxu0 0.0
        %1800 = vmatprep.subr.mxu0 0.0
        %1801 = vmatpush2.xpose.msra.mxu0 0.0
        %1802 = vmatprep.subr.mxu0 0.0
        %1803 = vmatpush2.xpose.msra.mxu0 0.0
        %1804 = vmatprep.subr.mxu0 0.0
        %1805 = vmatpush2.xpose.msra.mxu0 0.0
        %1806 = vmatprep.subr.mxu0 0.0
        %1807 = vmatpush2.xpose.msra.mxu0 0.0
        %1808 = vmatprep.subr.mxu0 0.0
        %1809 = vmatpush2.xpose.msra.mxu0 0.0
        %1810 = vmatprep.subr.mxu0 0.0
        %1811 = vmatpush2.xpose.msra.mxu0 0.0
        %1812 = vmatprep.subr.mxu0 0.0
        %1813 = vmatpush2.xpose.msra.mxu0 0.0
        %1814 = vmatprep.subr.mxu0 0.0
        %1815 = vmatpush2.xpose.msra.mxu0 0.0
        %1816 = vmatprep.subr.mxu0 0.0
        %1817 = vmatpush2.xpose.msra.mxu0 0.0
        %1818 = vmatprep.mubr.f32.mxu0 0.0
        %1819 = vmatmul.mubr.f32.gmra.mxu0 %v1635
        %v1820 = vpop.f32.mrf.mxu0
        %v1821 = vadd.f32 0.0, %v1820
        %v1822 = vpop.f32.mrf.mxu0
        %1823 = vmatprep.mubr.f32.mxu0 0.0
        %1824 = vmatmul.mubr.f32.gmra.mxu0 %v1638
        %v1825 = vpop.f32.mrf.mxu0
        %v1826 = vadd.f32 0.0, %v1825
        %v1827 = vpop.f32.mrf.mxu0
        %1828 = vmatprep.mubr.f32.mxu0 0.0
        %1829 = vmatmul.mubr.f32.gmra.mxu0 %v1641
        %v1830 = vpop.f32.mrf.mxu0
        %v1831 = vadd.f32 0.0, %v1830
        %v1832 = vpop.f32.mrf.mxu0
        %1833 = vmatprep.mubr.f32.mxu0 0.0
        %1834 = vmatmul.mubr.f32.gmra.mxu0 %v1644
        %v1835 = vpop.f32.mrf.mxu0
        %v1836 = vadd.f32 0.0, %v1835
        %v1837 = vpop.f32.mrf.mxu0
        %1838 = vmatprep.mubr.f32.mxu0 0.0
        %1839 = vmatmul.mubr.f32.gmra.mxu0 %v1647
        %v1840 = vpop.f32.mrf.mxu0
        %v1841 = vadd.f32 0.0, %v1840
        %v1842 = vpop.f32.mrf.mxu0
        %1843 = vmatprep.mubr.f32.mxu0 0.0
        %1844 = vmatmul.mubr.f32.gmra.mxu0 %v1650
        %v1845 = vpop.f32.mrf.mxu0
        %v1846 = vadd.f32 0.0, %v1845
        %v1847 = vpop.f32.mrf.mxu0
        %1848 = vmatprep.mubr.f32.mxu0 0.0
        %1849 = vmatmul.mubr.f32.gmra.mxu0 %v1653
        %v1850 = vpop.f32.mrf.mxu0
        %v1851 = vadd.f32 0.0, %v1850
        %v1852 = vpop.f32.mrf.mxu0
        %1853 = vmatprep.mubr.f32.mxu0 0.0
        %1854 = vmatmul.mubr.f32.gmra.mxu0 %v1656
        %v1855 = vpop.f32.mrf.mxu0
        %v1856 = vadd.f32 0.0, %v1855
        %v1857 = vpop.f32.mrf.mxu0
        %1858 = vmatprep.mubr.f32.mxu0 0.0
        %1859 = vmatmul.mubr.f32.gmra.mxu0 %v1659
        %v1860 = vpop.f32.mrf.mxu0
        %v1861 = vadd.f32 0.0, %v1860
        %v1862 = vpop.f32.mrf.mxu0
        %1863 = vmatprep.mubr.f32.mxu0 0.0
        %1864 = vmatmul.mubr.f32.gmra.mxu0 %v1662
        %v1865 = vpop.f32.mrf.mxu0
        %v1866 = vadd.f32 0.0, %v1865
        %v1867 = vpop.f32.mrf.mxu0
        %1868 = vmatprep.mubr.f32.mxu0 0.0
        %1869 = vmatmul.mubr.f32.gmra.mxu0 %v1665
        %v1870 = vpop.f32.mrf.mxu0
        %v1871 = vadd.f32 0.0, %v1870
        %v1872 = vpop.f32.mrf.mxu0
        %1873 = vmatprep.mubr.f32.mxu0 0.0
        %1874 = vmatmul.mubr.f32.gmra.mxu0 %v1668
        %v1875 = vpop.f32.mrf.mxu0
        %v1876 = vadd.f32 0.0, %v1875
        %v1877 = vpop.f32.mrf.mxu0
        %1878 = vmatprep.mubr.f32.mxu0 0.0
        %1879 = vmatmul.mubr.f32.gmra.mxu0 %v1671
        %v1880 = vpop.f32.mrf.mxu0
        %v1881 = vadd.f32 0.0, %v1880
        %v1882 = vpop.f32.mrf.mxu0
        %1883 = vmatprep.mubr.f32.mxu0 0.0
        %1884 = vmatmul.mubr.f32.gmra.mxu0 %v1674
        %v1885 = vpop.f32.mrf.mxu0
        %v1886 = vadd.f32 0.0, %v1885
        %v1887 = vpop.f32.mrf.mxu0
        %1888 = vmatprep.mubr.f32.mxu0 0.0
        %1889 = vmatmul.mubr.f32.gmra.mxu0 %v1677
        %v1890 = vpop.f32.mrf.mxu0
        %v1891 = vadd.f32 0.0, %v1890
        %v1892 = vpop.f32.mrf.mxu0
        %1893 = vmatprep.mubr.f32.mxu0 0.0
        %1894 = vmatmul.mubr.f32.gmra.mxu0 %v1680
        %v1895 = vpop.f32.mrf.mxu0
        %v1896 = vadd.f32 0.0, %v1895
        %v1897 = vpop.f32.mrf.mxu0
        %1898 = vmatprep.mubr.f32.mxu0 0.0
        %1899 = vmatmul.mubr.f32.gmra.mxu0 %v1683
        %v1900 = vpop.f32.mrf.mxu0
        %v1901 = vadd.f32 0.0, %v1900
        %v1902 = vpop.f32.mrf.mxu0
        %1903 = vmatprep.mubr.f32.mxu0 0.0
        %1904 = vmatmul.mubr.f32.gmra.mxu0 %v1686
        %v1905 = vpop.f32.mrf.mxu0
        %v1906 = vadd.f32 0.0, %v1905
        %v1907 = vpop.f32.mrf.mxu0
        %1908 = vmatprep.mubr.f32.mxu0 0.0
        %1909 = vmatmul.mubr.f32.gmra.mxu0 %v1689
        %v1910 = vpop.f32.mrf.mxu0
        %v1911 = vadd.f32 0.0, %v1910
        %v1912 = vpop.f32.mrf.mxu0
        %1913 = vmatprep.mubr.f32.mxu0 0.0
        %1914 = vmatmul.mubr.f32.gmra.mxu0 %v1692
        %v1915 = vpop.f32.mrf.mxu0
        %v1916 = vadd.f32 0.0, %v1915
        %v1917 = vpop.f32.mrf.mxu0
        %1918 = vmatprep.mubr.f32.mxu0 0.0
        %1919 = vmatmul.mubr.f32.gmra.mxu0 %v1695
        %v1920 = vpop.f32.mrf.mxu0
        %v1921 = vadd.f32 0.0, %v1920
        %v1922 = vpop.f32.mrf.mxu0
        %1923 = vmatprep.mubr.f32.mxu0 0.0
        %1924 = vmatmul.mubr.f32.gmra.mxu0 %v1698
        %v1925 = vpop.f32.mrf.mxu0
        %v1926 = vadd.f32 0.0, %v1925
        %v1927 = vpop.f32.mrf.mxu0
        %1928 = vmatprep.mubr.f32.mxu0 0.0
        %1929 = vmatmul.mubr.f32.gmra.mxu0 %v1701
        %v1930 = vpop.f32.mrf.mxu0
        %v1931 = vadd.f32 0.0, %v1930
        %v1932 = vpop.f32.mrf.mxu0
        %1933 = vmatprep.mubr.f32.mxu0 0.0
        %1934 = vmatmul.mubr.f32.gmra.mxu0 %v1704
        %v1935 = vpop.f32.mrf.mxu0
        %v1936 = vadd.f32 0.0, %v1935
        %v1937 = vpop.f32.mrf.mxu0
        %1938 = vmatprep.mubr.f32.mxu0 0.0
        %1939 = vmatmul.mubr.f32.gmra.mxu0 %v1707
        %v1940 = vpop.f32.mrf.mxu0
        %v1941 = vadd.f32 0.0, %v1940
        %v1942 = vpop.f32.mrf.mxu0
        %1943 = vmatprep.mubr.f32.mxu0 0.0
        %1944 = vmatmul.mubr.f32.gmra.mxu0 %v1710
        %v1945 = vpop.f32.mrf.mxu0
        %v1946 = vadd.f32 0.0, %v1945
        %v1947 = vpop.f32.mrf.mxu0
        %1948 = vmatprep.mubr.f32.mxu0 0.0
        %1949 = vmatmul.mubr.f32.gmra.mxu0 %v1713
        %v1950 = vpop.f32.mrf.mxu0
        %v1951 = vadd.f32 0.0, %v1950
        %v1952 = vpop.f32.mrf.mxu0
        %1953 = vmatprep.mubr.f32.mxu0 0.0
        %1954 = vmatmul.mubr.f32.gmra.mxu0 %v1716
        %v1955 = vpop.f32.mrf.mxu0
        %v1956 = vadd.f32 0.0, %v1955
        %v1957 = vpop.f32.mrf.mxu0
        %1958 = vmatprep.mubr.f32.mxu0 0.0
        %1959 = vmatmul.mubr.f32.gmra.mxu0 %v1719
        %v1960 = vpop.f32.mrf.mxu0
        %v1961 = vadd.f32 0.0, %v1960
        %v1962 = vpop.f32.mrf.mxu0
        %1963 = vmatprep.mubr.f32.mxu0 0.0
        %1964 = vmatmul.mubr.f32.gmra.mxu0 %v1722
        %v1965 = vpop.f32.mrf.mxu0
        %v1966 = vadd.f32 0.0, %v1965
        %v1967 = vpop.f32.mrf.mxu0
        %1968 = vmatprep.mubr.f32.mxu0 0.0
        %1969 = vmatmul.mubr.f32.gmra.mxu0 %v1725
        %v1970 = vpop.f32.mrf.mxu0
        %v1971 = vadd.f32 0.0, %v1970
        %v1972 = vpop.f32.mrf.mxu0
        %1973 = vmatprep.mubr.f32.mxu0 0.0
        %1974 = vmatmul.mubr.f32.gmra.mxu0 %v1728
        %v1975 = vpop.f32.mrf.mxu0
        %v1976 = vadd.f32 0.0, %v1975
        %v1977 = vpop.f32.mrf.mxu0
        %1978 = vdwg.mxu0
        %vm1979 = vcmask 523264
        %v1980 = vsel %vm1979, %v1821, -inf
        %1981 = vmax.xlane.f32.xlu0 %v1980
        %v1982 = vpop.xlane.xlu0 %1981
        %v1983 = vsel %vm1979, %v1826, -inf
        %1984 = vmax.xlane.f32.xlu0 %v1983
        %v1985 = vpop.xlane.xlu0 %1984
        %v1986 = vsel %vm1979, %v1831, -inf
        %1987 = vmax.xlane.f32.xlu0 %v1986
        %v1988 = vpop.xlane.xlu0 %1987
        %v1989 = vsel %vm1979, %v1836, -inf
        %1990 = vmax.xlane.f32.xlu0 %v1989
        %v1991 = vpop.xlane.xlu0 %1990
        %v1992 = vsel %vm1979, %v1841, -inf
        %1993 = vmax.xlane.f32.xlu0 %v1992
        %v1994 = vpop.xlane.xlu0 %1993
        %v1995 = vsel %vm1979, %v1846, -inf
        %1996 = vmax.xlane.f32.xlu0 %v1995
        %v1997 = vpop.xlane.xlu0 %1996
        %v1998 = vsel %vm1979, %v1851, -inf
        %1999 = vmax.xlane.f32.xlu0 %v1998
        %v2000 = vpop.xlane.xlu0 %1999
        %v2001 = vsel %vm1979, %v1856, -inf
        %2002 = vmax.xlane.f32.xlu0 %v2001
        %v2003 = vpop.xlane.xlu0 %2002
        %v2004 = vsel %vm1979, %v1861, -inf
        %2005 = vmax.xlane.f32.xlu0 %v2004
        %v2006 = vpop.xlane.xlu0 %2005
        %v2007 = vsel %vm1979, %v1866, -inf
        %2008 = vmax.xlane.f32.xlu0 %v2007
        %v2009 = vpop.xlane.xlu0 %2008
        %v2010 = vsel %vm1979, %v1871, -inf
        %2011 = vmax.xlane.f32.xlu0 %v2010
        %v2012 = vpop.xlane.xlu0 %2011
        %v2013 = vsel %vm1979, %v1876, -inf
        %2014 = vmax.xlane.f32.xlu0 %v2013
        %v2015 = vpop.xlane.xlu0 %2014
        %v2016 = vsel %vm1979, %v1881, -inf
        %2017 = vmax.xlane.f32.xlu0 %v2016
        %v2018 = vpop.xlane.xlu0 %2017
        %v2019 = vsel %vm1979, %v1886, -inf
        %2020 = vmax.xlane.f32.xlu0 %v2019
        %v2021 = vpop.xlane.xlu0 %2020
        %v2022 = vsel %vm1979, %v1891, -inf
        %2023 = vmax.xlane.f32.xlu0 %v2022
        %v2024 = vpop.xlane.xlu0 %2023
        %v2025 = vsel %vm1979, %v1896, -inf
        %2026 = vmax.xlane.f32.xlu0 %v2025
        %v2027 = vpop.xlane.xlu0 %2026
        %v2028 = vsel %vm1979, %v1901, -inf
        %2029 = vmax.xlane.f32.xlu0 %v2028
        %v2030 = vpop.xlane.xlu0 %2029
        %v2031 = vsel %vm1979, %v1906, -inf
        %2032 = vmax.xlane.f32.xlu0 %v2031
        %v2033 = vpop.xlane.xlu0 %2032
        %v2034 = vsel %vm1979, %v1911, -inf
        %2035 = vmax.xlane.f32.xlu0 %v2034
        %v2036 = vpop.xlane.xlu0 %2035
        %v2037 = vsel %vm1979, %v1916, -inf
        %2038 = vmax.xlane.f32.xlu0 %v2037
        %v2039 = vpop.xlane.xlu0 %2038
        %v2040 = vsel %vm1979, %v1921, -inf
        %2041 = vmax.xlane.f32.xlu0 %v2040
        %v2042 = vpop.xlane.xlu0 %2041
        %v2043 = vsel %vm1979, %v1926, -inf
        %2044 = vmax.xlane.f32.xlu0 %v2043
        %v2045 = vpop.xlane.xlu0 %2044
        %v2046 = vsel %vm1979, %v1931, -inf
        %2047 = vmax.xlane.f32.xlu0 %v2046
        %v2048 = vpop.xlane.xlu0 %2047
        %v2049 = vsel %vm1979, %v1936, -inf
        %2050 = vmax.xlane.f32.xlu0 %v2049
        %v2051 = vpop.xlane.xlu0 %2050
        %v2052 = vsel %vm1979, %v1941, -inf
        %2053 = vmax.xlane.f32.xlu0 %v2052
        %v2054 = vpop.xlane.xlu0 %2053
        %v2055 = vsel %vm1979, %v1946, -inf
        %2056 = vmax.xlane.f32.xlu0 %v2055
        %v2057 = vpop.xlane.xlu0 %2056
        %v2058 = vsel %vm1979, %v1951, -inf
        %2059 = vmax.xlane.f32.xlu0 %v2058
        %v2060 = vpop.xlane.xlu0 %2059
        %v2061 = vsel %vm1979, %v1956, -inf
        %2062 = vmax.xlane.f32.xlu0 %v2061
        %v2063 = vpop.xlane.xlu0 %2062
        %v2064 = vsel %vm1979, %v1961, -inf
        %2065 = vmax.xlane.f32.xlu0 %v2064
        %v2066 = vpop.xlane.xlu0 %2065
        %v2067 = vsel %vm1979, %v1966, -inf
        %2068 = vmax.xlane.f32.xlu0 %v2067
        %v2069 = vpop.xlane.xlu0 %2068
        %v2070 = vsel %vm1979, %v1971, -inf
        %2071 = vmax.xlane.f32.xlu0 %v2070
        %v2072 = vpop.xlane.xlu0 %2071
        %v2073 = vsel %vm1979, %v1976, -inf
        %2074 = vmax.xlane.f32.xlu0 %v2073
        %v2075 = vpop.xlane.xlu0 %2074
        %v2076 = vsub.f32 %v1821, %v1982
        %v2077 = vsub.f32 %v1826, %v1985
        %v2078 = vsub.f32 %v1831, %v1988
        %v2079 = vsub.f32 %v1836, %v1991
        %v2080 = vsub.f32 %v1841, %v1994
        %v2081 = vsub.f32 %v1846, %v1997
        %v2082 = vsub.f32 %v1851, %v2000
        %v2083 = vsub.f32 %v1856, %v2003
        %v2084 = vsub.f32 %v1861, %v2006
        %v2085 = vsub.f32 %v1866, %v2009
        %v2086 = vsub.f32 %v1871, %v2012
        %v2087 = vsub.f32 %v1876, %v2015
        %v2088 = vsub.f32 %v1881, %v2018
        %v2089 = vsub.f32 %v1886, %v2021
        %v2090 = vsub.f32 %v1891, %v2024
        %v2091 = vsub.f32 %v1896, %v2027
        %v2092 = vsub.f32 %v1901, %v2030
        %v2093 = vsub.f32 %v1906, %v2033
        %v2094 = vsub.f32 %v1911, %v2036
        %v2095 = vsub.f32 %v1916, %v2039
        %v2096 = vsub.f32 %v1921, %v2042
        %v2097 = vsub.f32 %v1926, %v2045
        %v2098 = vsub.f32 %v1931, %v2048
        %v2099 = vsub.f32 %v1936, %v2051
        %v2100 = vsub.f32 %v1941, %v2054
        %v2101 = vsub.f32 %v1946, %v2057
        %v2102 = vsub.f32 %v1951, %v2060
        %v2103 = vsub.f32 %v1956, %v2063
        %v2104 = vsub.f32 %v1961, %v2066
        %v2105 = vsub.f32 %v1966, %v2069
        %v2106 = vsub.f32 %v1971, %v2072
        %v2107 = vsub.f32 %v1976, %v2075
        %v2108 = vmul.f32 %v2076, 1.442695
        %v2109 = vpow.pop %v2108
        %v2110 = vmul.f32 %v2077, 1.442695
        %v2111 = vpow.pop %v2110
        %v2112 = vmul.f32 %v2078, 1.442695
        %v2113 = vpow.pop %v2112
        %v2114 = vmul.f32 %v2079, 1.442695
        %v2115 = vpow.pop %v2114
        %v2116 = vmul.f32 %v2080, 1.442695
        %v2117 = vpow.pop %v2116
        %v2118 = vmul.f32 %v2081, 1.442695
        %v2119 = vpow.pop %v2118
        %v2120 = vmul.f32 %v2082, 1.442695
        %v2121 = vpow.pop %v2120
        %v2122 = vmul.f32 %v2083, 1.442695
        %v2123 = vpow.pop %v2122
        %v2124 = vmul.f32 %v2084, 1.442695
        %v2125 = vpow.pop %v2124
        %v2126 = vmul.f32 %v2085, 1.442695
        %v2127 = vpow.pop %v2126
        %v2128 = vmul.f32 %v2086, 1.442695
        %v2129 = vpow.pop %v2128
        %v2130 = vmul.f32 %v2087, 1.442695
        %v2131 = vpow.pop %v2130
        %v2132 = vmul.f32 %v2088, 1.442695
        %v2133 = vpow.pop %v2132
        %v2134 = vmul.f32 %v2089, 1.442695
        %v2135 = vpow.pop %v2134
        %v2136 = vmul.f32 %v2090, 1.442695
        %v2137 = vpow.pop %v2136
        %v2138 = vmul.f32 %v2091, 1.442695
        %v2139 = vpow.pop %v2138
        %v2140 = vmul.f32 %v2092, 1.442695
        %v2141 = vpow.pop %v2140
        %v2142 = vmul.f32 %v2093, 1.442695
        %v2143 = vpow.pop %v2142
        %v2144 = vmul.f32 %v2094, 1.442695
        %v2145 = vpow.pop %v2144
        %v2146 = vmul.f32 %v2095, 1.442695
        %v2147 = vpow.pop %v2146
        %v2148 = vmul.f32 %v2096, 1.442695
        %v2149 = vpow.pop %v2148
        %v2150 = vmul.f32 %v2097, 1.442695
        %v2151 = vpow.pop %v2150
        %v2152 = vmul.f32 %v2098, 1.442695
        %v2153 = vpow.pop %v2152
        %v2154 = vmul.f32 %v2099, 1.442695
        %v2155 = vpow.pop %v2154
        %v2156 = vmul.f32 %v2100, 1.442695
        %v2157 = vpow.pop %v2156
        %v2158 = vmul.f32 %v2101, 1.442695
        %v2159 = vpow.pop %v2158
        %v2160 = vmul.f32 %v2102, 1.442695
        %v2161 = vpow.pop %v2160
        %v2162 = vmul.f32 %v2103, 1.442695
        %v2163 = vpow.pop %v2162
        %v2164 = vmul.f32 %v2104, 1.442695
        %v2165 = vpow.pop %v2164
        %v2166 = vmul.f32 %v2105, 1.442695
        %v2167 = vpow.pop %v2166
        %v2168 = vmul.f32 %v2106, 1.442695
        %v2169 = vpow.pop %v2168
        %v2170 = vmul.f32 %v2107, 1.442695
        %v2171 = vpow.pop %v2170
        %v2172 = vsel %vm1979, %v2109, 0.0
        %2173 = vadd.xlane.f32.xlu0 %v2172
        %v2174 = vpop.xlane.xlu0 %2173
        %v2175 = vsel %vm1979, %v2111, 0.0
        %2176 = vadd.xlane.f32.xlu0 %v2175
        %v2177 = vpop.xlane.xlu0 %2176
        %v2178 = vsel %vm1979, %v2113, 0.0
        %2179 = vadd.xlane.f32.xlu0 %v2178
        %v2180 = vpop.xlane.xlu0 %2179
        %v2181 = vsel %vm1979, %v2115, 0.0
        %2182 = vadd.xlane.f32.xlu0 %v2181
        %v2183 = vpop.xlane.xlu0 %2182
        %v2184 = vsel %vm1979, %v2117, 0.0
        %2185 = vadd.xlane.f32.xlu0 %v2184
        %v2186 = vpop.xlane.xlu0 %2185
        %v2187 = vsel %vm1979, %v2119, 0.0
        %2188 = vadd.xlane.f32.xlu0 %v2187
        %v2189 = vpop.xlane.xlu0 %2188
        %v2190 = vsel %vm1979, %v2121, 0.0
        %2191 = vadd.xlane.f32.xlu0 %v2190
        %v2192 = vpop.xlane.xlu0 %2191
        %v2193 = vsel %vm1979, %v2123, 0.0
        %2194 = vadd.xlane.f32.xlu0 %v2193
        %v2195 = vpop.xlane.xlu0 %2194
        %v2196 = vsel %vm1979, %v2125, 0.0
        %2197 = vadd.xlane.f32.xlu0 %v2196
        %v2198 = vpop.xlane.xlu0 %2197
        %v2199 = vsel %vm1979, %v2127, 0.0
        %2200 = vadd.xlane.f32.xlu0 %v2199
        %v2201 = vpop.xlane.xlu0 %2200
        %v2202 = vsel %vm1979, %v2129, 0.0
        %2203 = vadd.xlane.f32.xlu0 %v2202
        %v2204 = vpop.xlane.xlu0 %2203
        %v2205 = vsel %vm1979, %v2131, 0.0
        %2206 = vadd.xlane.f32.xlu0 %v2205
        %v2207 = vpop.xlane.xlu0 %2206
        %v2208 = vsel %vm1979, %v2133, 0.0
        %2209 = vadd.xlane.f32.xlu0 %v2208
        %v2210 = vpop.xlane.xlu0 %2209
        %v2211 = vsel %vm1979, %v2135, 0.0
        %2212 = vadd.xlane.f32.xlu0 %v2211
        %v2213 = vpop.xlane.xlu0 %2212
        %v2214 = vsel %vm1979, %v2137, 0.0
        %2215 = vadd.xlane.f32.xlu0 %v2214
        %v2216 = vpop.xlane.xlu0 %2215
        %v2217 = vsel %vm1979, %v2139, 0.0
        %2218 = vadd.xlane.f32.xlu0 %v2217
        %v2219 = vpop.xlane.xlu0 %2218
        %v2220 = vsel %vm1979, %v2141, 0.0
        %2221 = vadd.xlane.f32.xlu0 %v2220
        %v2222 = vpop.xlane.xlu0 %2221
        %v2223 = vsel %vm1979, %v2143, 0.0
        %2224 = vadd.xlane.f32.xlu0 %v2223
        %v2225 = vpop.xlane.xlu0 %2224
        %v2226 = vsel %vm1979, %v2145, 0.0
        %2227 = vadd.xlane.f32.xlu0 %v2226
        %v2228 = vpop.xlane.xlu0 %2227
        %v2229 = vsel %vm1979, %v2147, 0.0
        %2230 = vadd.xlane.f32.xlu0 %v2229
        %v2231 = vpop.xlane.xlu0 %2230
        %v2232 = vsel %vm1979, %v2149, 0.0
        %2233 = vadd.xlane.f32.xlu0 %v2232
        %v2234 = vpop.xlane.xlu0 %2233
        %v2235 = vsel %vm1979, %v2151, 0.0
        %2236 = vadd.xlane.f32.xlu0 %v2235
        %v2237 = vpop.xlane.xlu0 %2236
        %v2238 = vsel %vm1979, %v2153, 0.0
        %2239 = vadd.xlane.f32.xlu0 %v2238
        %v2240 = vpop.xlane.xlu0 %2239
        %v2241 = vsel %vm1979, %v2155, 0.0
        %2242 = vadd.xlane.f32.xlu0 %v2241
        %v2243 = vpop.xlane.xlu0 %2242
        %v2244 = vsel %vm1979, %v2157, 0.0
        %2245 = vadd.xlane.f32.xlu0 %v2244
        %v2246 = vpop.xlane.xlu0 %2245
        %v2247 = vsel %vm1979, %v2159, 0.0
        %2248 = vadd.xlane.f32.xlu0 %v2247
        %v2249 = vpop.xlane.xlu0 %2248
        %v2250 = vsel %vm1979, %v2161, 0.0
        %2251 = vadd.xlane.f32.xlu0 %v2250
        %v2252 = vpop.xlane.xlu0 %2251
        %v2253 = vsel %vm1979, %v2163, 0.0
        %2254 = vadd.xlane.f32.xlu0 %v2253
        %v2255 = vpop.xlane.xlu0 %2254
        %v2256 = vsel %vm1979, %v2165, 0.0
        %2257 = vadd.xlane.f32.xlu0 %v2256
        %v2258 = vpop.xlane.xlu0 %2257
        %v2259 = vsel %vm1979, %v2167, 0.0
        %2260 = vadd.xlane.f32.xlu0 %v2259
        %v2261 = vpop.xlane.xlu0 %2260
        %v2262 = vsel %vm1979, %v2169, 0.0
        %2263 = vadd.xlane.f32.xlu0 %v2262
        %v2264 = vpop.xlane.xlu0 %2263
        %v2265 = vsel %vm1979, %v2171, 0.0
        %2266 = vadd.xlane.f32.xlu0 %v2265
        %v2267 = vpop.xlane.xlu0 %2266
        %v2268 = vrcp.pop %v2174
        %v2269 = vrcp.pop %v2177
        %v2270 = vrcp.pop %v2180
        %v2271 = vrcp.pop %v2183
        %v2272 = vrcp.pop %v2186
        %v2273 = vrcp.pop %v2189
        %v2274 = vrcp.pop %v2192
        %v2275 = vrcp.pop %v2195
        %v2276 = vrcp.pop %v2198
        %v2277 = vrcp.pop %v2201
        %v2278 = vrcp.pop %v2204
        %v2279 = vrcp.pop %v2207
        %v2280 = vrcp.pop %v2210
        %v2281 = vrcp.pop %v2213
        %v2282 = vrcp.pop %v2216
        %v2283 = vrcp.pop %v2219
        %v2284 = vrcp.pop %v2222
        %v2285 = vrcp.pop %v2225
        %v2286 = vrcp.pop %v2228
        %v2287 = vrcp.pop %v2231
        %v2288 = vrcp.pop %v2234
        %v2289 = vrcp.pop %v2237
        %v2290 = vrcp.pop %v2240
        %v2291 = vrcp.pop %v2243
        %v2292 = vrcp.pop %v2246
        %v2293 = vrcp.pop %v2249
        %v2294 = vrcp.pop %v2252
        %v2295 = vrcp.pop %v2255
        %v2296 = vrcp.pop %v2258
        %v2297 = vrcp.pop %v2261
        %v2298 = vrcp.pop %v2264
        %v2299 = vrcp.pop %v2267
        %v2300 = vmul.f32 %v2109, %v2268
        %v2301 = vmul.f32 %v2111, %v2269
        %v2302 = vmul.f32 %v2113, %v2270
        %v2303 = vmul.f32 %v2115, %v2271
        %v2304 = vmul.f32 %v2117, %v2272
        %v2305 = vmul.f32 %v2119, %v2273
        %v2306 = vmul.f32 %v2121, %v2274
        %v2307 = vmul.f32 %v2123, %v2275
        %v2308 = vmul.f32 %v2125, %v2276
        %v2309 = vmul.f32 %v2127, %v2277
        %v2310 = vmul.f32 %v2129, %v2278
        %v2311 = vmul.f32 %v2131, %v2279
        %v2312 = vmul.f32 %v2133, %v2280
        %v2313 = vmul.f32 %v2135, %v2281
        %v2314 = vmul.f32 %v2137, %v2282
        %v2315 = vmul.f32 %v2139, %v2283
        %v2316 = vmul.f32 %v2141, %v2284
        %v2317 = vmul.f32 %v2143, %v2285
        %v2318 = vmul.f32 %v2145, %v2286
        %v2319 = vmul.f32 %v2147, %v2287
        %v2320 = vmul.f32 %v2149, %v2288
        %v2321 = vmul.f32 %v2151, %v2289
        %v2322 = vmul.f32 %v2153, %v2290
        %v2323 = vmul.f32 %v2155, %v2291
        %v2324 = vmul.f32 %v2157, %v2292
        %v2325 = vmul.f32 %v2159, %v2293
        %v2326 = vmul.f32 %v2161, %v2294
        %v2327 = vmul.f32 %v2163, %v2295
        %v2328 = vmul.f32 %v2165, %v2296
        %v2329 = vmul.f32 %v2167, %v2297
        %v2330 = vmul.f32 %v2169, %v2298
        %v2331 = vmul.f32 %v2171, %v2299
        %v2333 = vsel %vm1979, %v2300, 0
        %v2336 = vsel %vm1979, %v2301, 0
        %v2339 = vsel %vm1979, %v2302, 0
        %v2342 = vsel %vm1979, %v2303, 0
        %v2345 = vsel %vm1979, %v2304, 0
        %v2348 = vsel %vm1979, %v2305, 0
        %v2351 = vsel %vm1979, %v2306, 0
        %v2354 = vsel %vm1979, %v2307, 0
        %v2357 = vsel %vm1979, %v2308, 0
        %v2360 = vsel %vm1979, %v2309, 0
        %v2363 = vsel %vm1979, %v2310, 0
        %v2366 = vsel %vm1979, %v2311, 0
        %v2369 = vsel %vm1979, %v2312, 0
        %v2372 = vsel %vm1979, %v2313, 0
        %v2375 = vsel %vm1979, %v2314, 0
        %v2378 = vsel %vm1979, %v2315, 0
        %v2381 = vsel %vm1979, %v2316, 0
        %v2384 = vsel %vm1979, %v2317, 0
        %v2387 = vsel %vm1979, %v2318, 0
        %v2390 = vsel %vm1979, %v2319, 0
        %v2393 = vsel %vm1979, %v2320, 0
        %v2396 = vsel %vm1979, %v2321, 0
        %v2399 = vsel %vm1979, %v2322, 0
        %v2402 = vsel %vm1979, %v2323, 0
        %v2405 = vsel %vm1979, %v2324, 0
        %v2408 = vsel %vm1979, %v2325, 0
        %v2411 = vsel %vm1979, %v2326, 0
        %v2414 = vsel %vm1979, %v2327, 0
        %v2417 = vsel %vm1979, %v2328, 0
        %v2420 = vsel %vm1979, %v2329, 0
        %v2423 = vsel %vm1979, %v2330, 0
        %v2426 = vsel %vm1979, %v2331, 0
        %2428 = vmatprep.subr.mxu0 0.0
        %2429 = vmatpush1.msra.mxu0 0.0
        %2430 = vmatprep.subr.mxu0 0.0
        %2431 = vmatpush1.msra.mxu0 0.0
        %2432 = vmatprep.subr.mxu0 0.0
        %2433 = vmatpush1.msra.mxu0 0.0
        %2434 = vmatprep.subr.mxu0 0.0
        %2435 = vmatpush1.msra.mxu0 0.0
        %2436 = vmatprep.subr.mxu0 0.0
        %2437 = vmatpush1.msra.mxu0 0.0
        %2438 = vmatprep.subr.mxu0 0.0
        %2439 = vmatpush1.msra.mxu0 0.0
        %2440 = vmatprep.subr.mxu0 0.0
        %2441 = vmatpush1.msra.mxu0 0.0
        %2442 = vmatprep.subr.mxu0 0.0
        %2443 = vmatpush1.msra.mxu0 0.0
        %2444 = vmatprep.subr.mxu0 0.0
        %2445 = vmatpush1.msra.mxu0 %v1014
        %2446 = vmatprep.subr.mxu0 0.0
        %2447 = vmatpush1.msra.mxu0 %v1009
        %2448 = vmatprep.subr.mxu0 0.0
        %2449 = vmatpush1.msra.mxu0 %v1004
        %2450 = vmatprep.subr.mxu0 0.0
        %2451 = vmatpush1.msra.mxu0 %v999
        %2452 = vmatprep.subr.mxu0 0.0
        %2453 = vmatpush1.msra.mxu0 %v994
        %2454 = vmatprep.subr.mxu0 0.0
        %2455 = vmatpush1.msra.mxu0 %v989
        %2456 = vmatprep.subr.mxu0 0.0
        %2457 = vmatpush1.msra.mxu0 %v984
        %2458 = vmatprep.subr.mxu0 0.0
        %2459 = vmatpush1.msra.mxu0 %v979
        %2460 = vmatprep.subr.mxu0 0.0
        %2461 = vmatpush2.msra.mxu0 0.0
        %2462 = vmatprep.subr.mxu0 0.0
        %2463 = vmatpush2.msra.mxu0 0.0
        %2464 = vmatprep.subr.mxu0 0.0
        %2465 = vmatpush2.msra.mxu0 0.0
        %2466 = vmatprep.subr.mxu0 0.0
        %2467 = vmatpush2.msra.mxu0 0.0
        %2468 = vmatprep.subr.mxu0 0.0
        %2469 = vmatpush2.msra.mxu0 0.0
        %2470 = vmatprep.subr.mxu0 0.0
        %2471 = vmatpush2.msra.mxu0 0.0
        %2472 = vmatprep.subr.mxu0 0.0
        %2473 = vmatpush2.msra.mxu0 0.0
        %2474 = vmatprep.subr.mxu0 0.0
        %2475 = vmatpush2.msra.mxu0 0.0
        %2476 = vmatprep.subr.mxu0 0.0
        %2477 = vmatpush2.msra.mxu0 0.0
        %2478 = vmatprep.subr.mxu0 0.0
        %2479 = vmatpush2.msra.mxu0 0.0
        %2480 = vmatprep.subr.mxu0 0.0
        %2481 = vmatpush2.msra.mxu0 0.0
        %2482 = vmatprep.subr.mxu0 0.0
        %2483 = vmatpush2.msra.mxu0 0.0
        %2484 = vmatprep.subr.mxu0 0.0
        %2485 = vmatpush2.msra.mxu0 0.0
        %2486 = vmatprep.subr.mxu0 0.0
        %2487 = vmatpush2.msra.mxu0 0.0
        %2488 = vmatprep.subr.mxu0 0.0
        %2489 = vmatpush2.msra.mxu0 0.0
        %2490 = vmatprep.subr.mxu0 0.0
        %2491 = vmatpush2.msra.mxu0 0.0
        %2492 = vmatprep.mubr.f32.mxu0 0.0
        %2493 = vmatmul.mubr.f32.gmra.mxu0 %v2333
        %v2494 = vpop.f32.mrf.mxu0
        %v2495 = vadd.f32 0.0, %v2494
        %v2496 = vpop.f32.mrf.mxu0
        %2497 = vmatprep.mubr.f32.mxu0 0.0
        %2498 = vmatmul.mubr.f32.gmra.mxu0 %v2336
        %v2499 = vpop.f32.mrf.mxu0
        %v2500 = vadd.f32 0.0, %v2499
        %v2501 = vpop.f32.mrf.mxu0
        %2502 = vmatprep.mubr.f32.mxu0 0.0
        %2503 = vmatmul.mubr.f32.gmra.mxu0 %v2339
        %v2504 = vpop.f32.mrf.mxu0
        %v2505 = vadd.f32 0.0, %v2504
        %v2506 = vpop.f32.mrf.mxu0
        %2507 = vmatprep.mubr.f32.mxu0 0.0
        %2508 = vmatmul.mubr.f32.gmra.mxu0 %v2342
        %v2509 = vpop.f32.mrf.mxu0
        %v2510 = vadd.f32 0.0, %v2509
        %v2511 = vpop.f32.mrf.mxu0
        %2512 = vmatprep.mubr.f32.mxu0 0.0
        %2513 = vmatmul.mubr.f32.gmra.mxu0 %v2345
        %v2514 = vpop.f32.mrf.mxu0
        %v2515 = vadd.f32 0.0, %v2514
        %v2516 = vpop.f32.mrf.mxu0
        %2517 = vmatprep.mubr.f32.mxu0 0.0
        %2518 = vmatmul.mubr.f32.gmra.mxu0 %v2348
        %v2519 = vpop.f32.mrf.mxu0
        %v2520 = vadd.f32 0.0, %v2519
        %v2521 = vpop.f32.mrf.mxu0
        %2522 = vmatprep.mubr.f32.mxu0 0.0
        %2523 = vmatmul.mubr.f32.gmra.mxu0 %v2351
        %v2524 = vpop.f32.mrf.mxu0
        %v2525 = vadd.f32 0.0, %v2524
        %v2526 = vpop.f32.mrf.mxu0
        %2527 = vmatprep.mubr.f32.mxu0 0.0
        %2528 = vmatmul.mubr.f32.gmra.mxu0 %v2354
        %v2529 = vpop.f32.mrf.mxu0
        %v2530 = vadd.f32 0.0, %v2529
        %v2531 = vpop.f32.mrf.mxu0
        %2532 = vmatprep.mubr.f32.mxu0 0.0
        %2533 = vmatmul.mubr.f32.gmra.mxu0 %v2357
        %v2534 = vpop.f32.mrf.mxu0
        %v2535 = vadd.f32 0.0, %v2534
        %v2536 = vpop.f32.mrf.mxu0
        %2537 = vmatprep.mubr.f32.mxu0 0.0
        %2538 = vmatmul.mubr.f32.gmra.mxu0 %v2360
        %v2539 = vpop.f32.mrf.mxu0
        %v2540 = vadd.f32 0.0, %v2539
        %v2541 = vpop.f32.mrf.mxu0
        %2542 = vmatprep.mubr.f32.mxu0 0.0
        %2543 = vmatmul.mubr.f32.gmra.mxu0 %v2363
        %v2544 = vpop.f32.mrf.mxu0
        %v2545 = vadd.f32 0.0, %v2544
        %v2546 = vpop.f32.mrf.mxu0
        %2547 = vmatprep.mubr.f32.mxu0 0.0
        %2548 = vmatmul.mubr.f32.gmra.mxu0 %v2366
        %v2549 = vpop.f32.mrf.mxu0
        %v2550 = vadd.f32 0.0, %v2549
        %v2551 = vpop.f32.mrf.mxu0
        %2552 = vmatprep.mubr.f32.mxu0 0.0
        %2553 = vmatmul.mubr.f32.gmra.mxu0 %v2369
        %v2554 = vpop.f32.mrf.mxu0
        %v2555 = vadd.f32 0.0, %v2554
        %v2556 = vpop.f32.mrf.mxu0
        %2557 = vmatprep.mubr.f32.mxu0 0.0
        %2558 = vmatmul.mubr.f32.gmra.mxu0 %v2372
        %v2559 = vpop.f32.mrf.mxu0
        %v2560 = vadd.f32 0.0, %v2559
        %v2561 = vpop.f32.mrf.mxu0
        %2562 = vmatprep.mubr.f32.mxu0 0.0
        %2563 = vmatmul.mubr.f32.gmra.mxu0 %v2375
        %v2564 = vpop.f32.mrf.mxu0
        %v2565 = vadd.f32 0.0, %v2564
        %v2566 = vpop.f32.mrf.mxu0
        %2567 = vmatprep.mubr.f32.mxu0 0.0
        %2568 = vmatmul.mubr.f32.gmra.mxu0 %v2378
        %v2569 = vpop.f32.mrf.mxu0
        %v2570 = vadd.f32 0.0, %v2569
        %v2571 = vpop.f32.mrf.mxu0
        %2572 = vmatprep.mubr.f32.mxu0 0.0
        %2573 = vmatmul.mubr.f32.gmra.mxu0 %v2381
        %v2574 = vpop.f32.mrf.mxu0
        %v2575 = vadd.f32 0.0, %v2574
        %v2576 = vpop.f32.mrf.mxu0
        %2577 = vmatprep.mubr.f32.mxu0 0.0
        %2578 = vmatmul.mubr.f32.gmra.mxu0 %v2384
        %v2579 = vpop.f32.mrf.mxu0
        %v2580 = vadd.f32 0.0, %v2579
        %v2581 = vpop.f32.mrf.mxu0
        %2582 = vmatprep.mubr.f32.mxu0 0.0
        %2583 = vmatmul.mubr.f32.gmra.mxu0 %v2387
        %v2584 = vpop.f32.mrf.mxu0
        %v2585 = vadd.f32 0.0, %v2584
        %v2586 = vpop.f32.mrf.mxu0
        %2587 = vmatprep.mubr.f32.mxu0 0.0
        %2588 = vmatmul.mubr.f32.gmra.mxu0 %v2390
        %v2589 = vpop.f32.mrf.mxu0
        %v2590 = vadd.f32 0.0, %v2589
        %v2591 = vpop.f32.mrf.mxu0
        %2592 = vmatprep.mubr.f32.mxu0 0.0
        %2593 = vmatmul.mubr.f32.gmra.mxu0 %v2393
        %v2594 = vpop.f32.mrf.mxu0
        %v2595 = vadd.f32 0.0, %v2594
        %v2596 = vpop.f32.mrf.mxu0
        %2597 = vmatprep.mubr.f32.mxu0 0.0
        %2598 = vmatmul.mubr.f32.gmra.mxu0 %v2396
        %v2599 = vpop.f32.mrf.mxu0
        %v2600 = vadd.f32 0.0, %v2599
        %v2601 = vpop.f32.mrf.mxu0
        %2602 = vmatprep.mubr.f32.mxu0 0.0
        %2603 = vmatmul.mubr.f32.gmra.mxu0 %v2399
        %v2604 = vpop.f32.mrf.mxu0
        %v2605 = vadd.f32 0.0, %v2604
        %v2606 = vpop.f32.mrf.mxu0
        %2607 = vmatprep.mubr.f32.mxu0 0.0
        %2608 = vmatmul.mubr.f32.gmra.mxu0 %v2402
        %v2609 = vpop.f32.mrf.mxu0
        %v2610 = vadd.f32 0.0, %v2609
        %v2611 = vpop.f32.mrf.mxu0
        %2612 = vmatprep.mubr.f32.mxu0 0.0
        %2613 = vmatmul.mubr.f32.gmra.mxu0 %v2405
        %v2614 = vpop.f32.mrf.mxu0
        %v2615 = vadd.f32 0.0, %v2614
        %v2616 = vpop.f32.mrf.mxu0
        %2617 = vmatprep.mubr.f32.mxu0 0.0
        %2618 = vmatmul.mubr.f32.gmra.mxu0 %v2408
        %v2619 = vpop.f32.mrf.mxu0
        %v2620 = vadd.f32 0.0, %v2619
        %v2621 = vpop.f32.mrf.mxu0
        %2622 = vmatprep.mubr.f32.mxu0 0.0
        %2623 = vmatmul.mubr.f32.gmra.mxu0 %v2411
        %v2624 = vpop.f32.mrf.mxu0
        %v2625 = vadd.f32 0.0, %v2624
        %v2626 = vpop.f32.mrf.mxu0
        %2627 = vmatprep.mubr.f32.mxu0 0.0
        %2628 = vmatmul.mubr.f32.gmra.mxu0 %v2414
        %v2629 = vpop.f32.mrf.mxu0
        %v2630 = vadd.f32 0.0, %v2629
        %v2631 = vpop.f32.mrf.mxu0
        %2632 = vmatprep.mubr.f32.mxu0 0.0
        %2633 = vmatmul.mubr.f32.gmra.mxu0 %v2417
        %v2634 = vpop.f32.mrf.mxu0
        %v2635 = vadd.f32 0.0, %v2634
        %v2636 = vpop.f32.mrf.mxu0
        %2637 = vmatprep.mubr.f32.mxu0 0.0
        %2638 = vmatmul.mubr.f32.gmra.mxu0 %v2420
        %v2639 = vpop.f32.mrf.mxu0
        %v2640 = vadd.f32 0.0, %v2639
        %v2641 = vpop.f32.mrf.mxu0
        %2642 = vmatprep.mubr.f32.mxu0 0.0
        %2643 = vmatmul.mubr.f32.gmra.mxu0 %v2423
        %v2644 = vpop.f32.mrf.mxu0
        %v2645 = vadd.f32 0.0, %v2644
        %v2646 = vpop.f32.mrf.mxu0
        %2647 = vmatprep.mubr.f32.mxu0 0.0
        %2648 = vmatmul.mubr.f32.gmra.mxu0 %v2426
        %v2649 = vpop.f32.mrf.mxu0
        %v2650 = vadd.f32 0.0, %v2649
        %v2651 = vpop.f32.mrf.mxu0
        %2652 = vdwg.mxu0
        %2653 = vrot.lane.b32.xlu0 %v2300, 64
        %v2654 = vpop.permute.xlu0 %2653
        %2655 = vrot.lane.b32.xlu0 %v2301, 64
        %v2656 = vpop.permute.xlu0 %2655
        %2657 = vrot.lane.b32.xlu0 %v2302, 64
        %v2658 = vpop.permute.xlu0 %2657
        %2659 = vrot.lane.b32.xlu0 %v2303, 64
        %v2660 = vpop.permute.xlu0 %2659
        %2661 = vrot.lane.b32.xlu0 %v2304, 64
        %v2662 = vpop.permute.xlu0 %2661
        %2663 = vrot.lane.b32.xlu0 %v2305, 64
        %v2664 = vpop.permute.xlu0 %2663
        %2665 = vrot.lane.b32.xlu0 %v2306, 64
        %v2666 = vpop.permute.xlu0 %2665
        %2667 = vrot.lane.b32.xlu0 %v2307, 64
        %v2668 = vpop.permute.xlu0 %2667
        %2669 = vrot.lane.b32.xlu0 %v2308, 64
        %v2670 = vpop.permute.xlu0 %2669
        %2671 = vrot.lane.b32.xlu0 %v2309, 64
        %v2672 = vpop.permute.xlu0 %2671
        %2673 = vrot.lane.b32.xlu0 %v2310, 64
        %v2674 = vpop.permute.xlu0 %2673
        %2675 = vrot.lane.b32.xlu0 %v2311, 64
        %v2676 = vpop.permute.xlu0 %2675
        %2677 = vrot.lane.b32.xlu0 %v2312, 64
        %v2678 = vpop.permute.xlu0 %2677
        %2679 = vrot.lane.b32.xlu0 %v2313, 64
        %v2680 = vpop.permute.xlu0 %2679
        %2681 = vrot.lane.b32.xlu0 %v2314, 64
        %v2682 = vpop.permute.xlu0 %2681
        %2683 = vrot.lane.b32.xlu0 %v2315, 64
        %v2684 = vpop.permute.xlu0 %2683
        %2685 = vrot.lane.b32.xlu0 %v2316, 64
        %v2686 = vpop.permute.xlu0 %2685
        %2687 = vrot.lane.b32.xlu0 %v2317, 64
        %v2688 = vpop.permute.xlu0 %2687
        %2689 = vrot.lane.b32.xlu0 %v2318, 64
        %v2690 = vpop.permute.xlu0 %2689
        %2691 = vrot.lane.b32.xlu0 %v2319, 64
        %v2692 = vpop.permute.xlu0 %2691
        %2693 = vrot.lane.b32.xlu0 %v2320, 64
        %v2694 = vpop.permute.xlu0 %2693
        %2695 = vrot.lane.b32.xlu0 %v2321, 64
        %v2696 = vpop.permute.xlu0 %2695
        %2697 = vrot.lane.b32.xlu0 %v2322, 64
        %v2698 = vpop.permute.xlu0 %2697
        %2699 = vrot.lane.b32.xlu0 %v2323, 64
        %v2700 = vpop.permute.xlu0 %2699
        %2701 = vrot.lane.b32.xlu0 %v2324, 64
        %v2702 = vpop.permute.xlu0 %2701
        %2703 = vrot.lane.b32.xlu0 %v2325, 64
        %v2704 = vpop.permute.xlu0 %2703
        %2705 = vrot.lane.b32.xlu0 %v2326, 64
        %v2706 = vpop.permute.xlu0 %2705
        %2707 = vrot.lane.b32.xlu0 %v2327, 64
        %v2708 = vpop.permute.xlu0 %2707
        %2709 = vrot.lane.b32.xlu0 %v2328, 64
        %v2710 = vpop.permute.xlu0 %2709
        %2711 = vrot.lane.b32.xlu0 %v2329, 64
        %v2712 = vpop.permute.xlu0 %2711
        %2713 = vrot.lane.b32.xlu0 %v2330, 64
        %v2714 = vpop.permute.xlu0 %2713
        %2715 = vrot.lane.b32.xlu0 %v2331, 64
        %v2716 = vpop.permute.xlu0 %2715
        %v2749 = vsel %vm1979, %v2495, %v2654
        %v2750 = vsel %vm1979, %v2500, %v2656
        %v2751 = vsel %vm1979, %v2505, %v2658
        %v2752 = vsel %vm1979, %v2510, %v2660
        %v2753 = vsel %vm1979, %v2515, %v2662
        %v2754 = vsel %vm1979, %v2520, %v2664
        %v2755 = vsel %vm1979, %v2525, %v2666
        %v2756 = vsel %vm1979, %v2530, %v2668
        %v2757 = vsel %vm1979, %v2535, %v2670
        %v2758 = vsel %vm1979, %v2540, %v2672
        %v2759 = vsel %vm1979, %v2545, %v2674
        %v2760 = vsel %vm1979, %v2550, %v2676
        %v2761 = vsel %vm1979, %v2555, %v2678
        %v2762 = vsel %vm1979, %v2560, %v2680
        %v2763 = vsel %vm1979, %v2565, %v2682
        %v2764 = vsel %vm1979, %v2570, %v2684
        %v2765 = vsel %vm1979, %v2575, %v2686
        %v2766 = vsel %vm1979, %v2580, %v2688
        %v2767 = vsel %vm1979, %v2585, %v2690
        %v2768 = vsel %vm1979, %v2590, %v2692
        %v2769 = vsel %vm1979, %v2595, %v2694
        %v2770 = vsel %vm1979, %v2600, %v2696
        %v2771 = vsel %vm1979, %v2605, %v2698
        %v2772 = vsel %vm1979, %v2610, %v2700
        %v2773 = vsel %vm1979, %v2615, %v2702
        %v2774 = vsel %vm1979, %v2620, %v2704
        %v2775 = vsel %vm1979, %v2625, %v2706
        %v2776 = vsel %vm1979, %v2630, %v2708
        %v2777 = vsel %vm1979, %v2635, %v2710
        %v2778 = vsel %vm1979, %v2640, %v2712
        %v2779 = vsel %vm1979, %v2645, %v2714
        %v2780 = vsel %vm1979, %v2650, %v2716
        %2781 = vst [vmem:[%s365] sm:$0xff] %v2749
        %2782 = vst [vmem:[%s365 + $0x8] sm:$0xff] %v2750
        %2783 = vst [vmem:[%s365 + $0x10] sm:$0xff] %v2751
        %2784 = vst [vmem:[%s365 + $0x18] sm:$0xff] %v2752
        %2785 = vst [vmem:[%s365 + $0x20] sm:$0xff] %v2753
        %2786 = vst [vmem:[%s365 + $0x28] sm:$0xff] %v2754
        %2787 = vst [vmem:[%s365 + $0x30] sm:$0xff] %v2755
        %2788 = vst [vmem:[%s365 + $0x38] sm:$0xff] %v2756
        %2789 = vst [vmem:[%s365 + $0x40] sm:$0xff] %v2757
        %2790 = vst [vmem:[%s365 + $0x48] sm:$0xff] %v2758
        %2791 = vst [vmem:[%s365 + $0x50] sm:$0xff] %v2759
        %2792 = vst [vmem:[%s365 + $0x58] sm:$0xff] %v2760
        %2793 = vst [vmem:[%s365 + $0x60] sm:$0xff] %v2761
        %2794 = vst [vmem:[%s365 + $0x68] sm:$0xff] %v2762
        %2795 = vst [vmem:[%s365 + $0x70] sm:$0xff] %v2763
        %2796 = vst [vmem:[%s365 + $0x78] sm:$0xff] %v2764
        %2797 = vst [vmem:[%s365 + $0x80] sm:$0xff] %v2765
        %2798 = vst [vmem:[%s365 + $0x88] sm:$0xff] %v2766
        %2799 = vst [vmem:[%s365 + $0x90] sm:$0xff] %v2767
        %2800 = vst [vmem:[%s365 + $0x98] sm:$0xff] %v2768
        %2801 = vst [vmem:[%s365 + $0xa0] sm:$0xff] %v2769
        %2802 = vst [vmem:[%s365 + $0xa8] sm:$0xff] %v2770
        %2803 = vst [vmem:[%s365 + $0xb0] sm:$0xff] %v2771
        %2804 = vst [vmem:[%s365 + $0xb8] sm:$0xff] %v2772
        %2805 = vst [vmem:[%s365 + $0xc0] sm:$0xff] %v2773
        %2806 = vst [vmem:[%s365 + $0xc8] sm:$0xff] %v2774
        %2807 = vst [vmem:[%s365 + $0xd0] sm:$0xff] %v2775
        %2808 = vst [vmem:[%s365 + $0xd8] sm:$0xff] %v2776
        %2809 = vst [vmem:[%s365 + $0xe0] sm:$0xff] %v2777
        %2810 = vst [vmem:[%s365 + $0xe8] sm:$0xff] %v2778
        %2811 = vst [vmem:[%s365 + $0xf0] sm:$0xff] %v2779
        %2812 = vst [vmem:[%s365 + $0xf8] sm:$0xff] %v2780
        %s2813 = sand.u32 %s246, 1
        %s2814 = scalar_lea.sflag [#allocation3], %s2813
        %s2815 = sand.u32 %s246, 1
        %s2816 = smul.addr %s2815, 256
        %s2817 = scalar_lea.vmem [#allocation2], %s2816
        // Predicated region
        $region57: #{tpu_custom_call.1} parent=55 // pred_check
          %p2818 = pneg %p256
        $region58: #{tpu_custom_call.1} parent=55 // pred_check_branch
          %2820 = sbr.rel (%p2818) target = $region60
        $region59: #{tpu_custom_call.1} parent=55 // pred_region
          %s2821 = smul.u32 32, %s28
          %s2823 = ssub.s32 4096, 4096
          %2824 = vsyncadd %s2814, %s2823
          %s2825 = smul.addr %s27, 32
          %s2826 = sadd.s32 %s2821, %s2825
          %s2827 = smul.addr %s2826, 128
          %s2828 = scalar_lea.hbm %s9, %s2827
          %s2829 = sshll.u32 %s2817, 4
          %s2830 = int_to_ptr.vmem [resolvable:$true] %s2829
          %2835 = dma.vmem_to_hbm [thread:$0]  %s2830, 4096, %s2828, %s2814, 128, 128, 8
        $region60: #{tpu_custom_call.1} parent=55 // pred_fallthru
          _
      $region56: #{tpu_custom_call.1} parent=5 // pred_fallthru
        _
      %p2836 = scmp.le.s32.totalorder 2, %s18
      // Predicated region
      $region61: #{tpu_custom_call.1} parent=5 // pred_check
        %p2837 = pneg %p2836
      $region62: #{tpu_custom_call.1} parent=5 // pred_check_branch
        %2839 = sbr.rel (%p2837) target = $region64
      $region63: #{tpu_custom_call.1} parent=5 // pred_region
        %s2840 = ssub.s32 %s18, 2
        // Predicated region
        $region65: #{tpu_custom_call.1} parent=63 // pred_check
          %p2841 = pneg %p262
        $region66: #{tpu_custom_call.1} parent=63 // pred_check_branch
          %2843 = sbr.rel (%p2841) target = $region68
        $region67: #{tpu_custom_call.1} parent=63 // pred_region
          %s2844 = sand.u32 %s247, 1
          %s2845 = scalar_lea.sflag [#allocation3], %s2844
          %s2846 = sand.u32 %s247, 1
          %s2847 = smul.addr %s2846, 256
          %s2848 = scalar_lea.vmem [#allocation2], %s2847
          %2849 = dma.done %s2845, 4096
        $region68: #{tpu_custom_call.1} parent=63 // pred_fallthru
          _
      $region64: #{tpu_custom_call.1} parent=5 // pred_fallthru
        _
    $region6: #{tpu_custom_call.1} parent=1 // loop_footer
      %s22 = sadd.s32 1, %s18
    $region7: #{tpu_custom_call.1} parent=1 // loop_footer_branch
      %17 = sbr.rel target = $region3
    $region8: #{tpu_custom_call.1} parent=1 // loop_exit
      _
    %2850 = vsyncpa [#allocation3], 1
    %s2851 = scalar_lea.sflag [#allocation3], 1
    %2852 = vsyncpa %s2851, 1

</llo_original>
